<compile_context>
chip_gen: v7x
topology: tpu7x:2x2x1
jax: 0.10.0
libtpu: 0.0.40
codegen_flags: <defaults>
</compile_context>

<pallas_src>
import functools

import numpy as np
import jax
import jax.numpy as jnp
from jax import lax
from jax.experimental import pallas as pl
from jax.experimental.pallas import tpu as pltpu


# ---------------------------------------------------------------------------
# Fused kernel: depthwise 3x3 + pointwise 1x1 + (epilogue) BatchNorm + ReLU.
# Grid: (N,) -- one batch element per step; output block is resident in VMEM
# across the whole grid, so the axis must be "arbitrary" (sequential).
# ---------------------------------------------------------------------------
def _dwsep_bn_relu_kernel(xp_ref, wdw_ref, bdw_ref, wpwt_ref, bpw_ref,
                          gamma_ref, beta_ref, out_ref,
                          *, N, H, W, C, Cout, eps):
    n = pl.program_id(0)

    x = xp_ref[0]          # (H+2, W+2, C)  zero-padded input plane (C on lanes)
    wdw = wdw_ref[...]     # (3, 3, C)      depthwise weights

    # ---- depthwise 3x3, stride 1 ------------------------------------------
    # Hoist the W (sublane) slice per dx: 3 slices (2 unaligned) instead of 9
    # slices (6 unaligned) -> fewer relayout copies.  dy slices hit the leading
    # axis and are pure addressing.
    acc = jnp.zeros((H, W, C), jnp.float32)
    for dx in range(3):
        xs = x[:, dx:dx + W, :]                                # (H+2, W, C)
        for dy in range(3):
            acc = acc + xs[dy:dy + H] * wdw[dy, dx][None, None, :]
    acc = acc + bdw_ref[...].reshape(1, 1, C)

    # ---- pointwise 1x1 on the MXU, emitted channel-major --------------------
    # yt[o, p] = sum_c wpw_t[o, c] * acc[p, c]   (A @ B^T contraction)
    acc2 = acc.reshape(H * W, C)                               # (H*W, C)
    yt = lax.dot_general(wpwt_ref[...], acc2,
                         dimension_numbers=(((1,), (1,)), ((), ())),
                         preferred_element_type=jnp.float32)   # (Cout, H*W)
    yt = yt + bpw_ref[...]                                     # bias (Cout, 1)

    # Lane-dense store into the VMEM-resident output slab for this batch elem.
    out_ref[n] = yt

    # ---- fused BatchNorm (training-mode batch stats) + ReLU epilogue --------
    @pl.when(n == N - 1)
    def _():
        y_all = out_ref[...]                                   # (N, Cout, H*W)
        inv_cnt = 1.0 / float(N * H * W)
        mean = jnp.sum(jnp.sum(y_all, axis=2, keepdims=True),
                       axis=0, keepdims=True) * inv_cnt        # (1, Cout, 1)
        d = y_all - mean
        var = jnp.sum(jnp.sum(d * d, axis=2, keepdims=True),
                      axis=0, keepdims=True) * inv_cnt         # biased variance
        var = jnp.maximum(var, 0.0)
        inv_std = lax.rsqrt(var + eps)
        scale = gamma_ref[...].reshape(1, Cout, 1) * inv_std
        shift = beta_ref[...].reshape(1, Cout, 1) - mean * scale
        out_ref[...] = jnp.maximum(y_all * scale + shift, 0.0)


# ---------------------------------------------------------------------------
# Wrapper: layout prep (transpose + halo pad), single pallas_call, free reshape.
# ---------------------------------------------------------------------------
def depthwise_separable_conv(x_nchw, params, *, eps=1e-5):
    dw_w, dw_b, pw_w, pw_b, gamma, beta = params
    N, C, H, W = x_nchw.shape
    Cout = pw_w.shape[1]

    # NCHW -> NHWC (channels on lanes for the depthwise taps), halo pad of 1.
    x = jnp.transpose(x_nchw, (0, 2, 3, 1)).astype(jnp.float32)
    xp = jnp.pad(x, ((0, 0), (1, 1), (1, 1), (0, 0)))

    kernel = functools.partial(_dwsep_bn_relu_kernel,
                               N=N, H=H, W=W, C=C, Cout=Cout, eps=float(eps))

    out = pl.pallas_call(
        kernel,
        out_shape=jax.ShapeDtypeStruct((N, Cout, H * W), jnp.float32),
        grid=(N,),
        in_specs=[
            pl.BlockSpec((1, H + 2, W + 2, C), lambda n: (n, 0, 0, 0)),  # xp
            pl.BlockSpec((3, 3, C), lambda n: (0, 0, 0)),                # dw weight
            pl.BlockSpec((1, C), lambda n: (0, 0)),                      # dw bias
            pl.BlockSpec((Cout, C), lambda n: (0, 0)),                   # pw weight^T
            pl.BlockSpec((Cout, 1), lambda n: (0, 0)),                   # pw bias
            pl.BlockSpec((Cout, 1), lambda n: (0, 0)),                   # gamma
            pl.BlockSpec((Cout, 1), lambda n: (0, 0)),                   # beta
        ],
        # Full output resident in VMEM across the grid (constant index map).
        out_specs=pl.BlockSpec((N, Cout, H * W), lambda n: (0, 0, 0)),
        compiler_params=pltpu.CompilerParams(
            dimension_semantics=("arbitrary",)),
    )(xp, dw_w, dw_b.reshape(1, C), jnp.transpose(pw_w),
      pw_b.reshape(Cout, 1), gamma.reshape(Cout, 1), beta.reshape(Cout, 1))

    # (N, Cout, H*W) is already channel-major -> NCHW is a free reshape.
    return out.reshape(N, Cout, H, W)


# ---------------------------------------------------------------------------
# Pure-JAX reference (mirrors the PyTorch forward in training mode)
# ---------------------------------------------------------------------------
def reference(x_nchw, params, *, eps=1e-5):
    dw_w, dw_b, pw_w, pw_b, gamma, beta = params
    C = dw_w.shape[2]
    w_oihw = jnp.transpose(dw_w, (2, 0, 1))[:, None, :, :]
    y = lax.conv_general_dilated(
        x_nchw, w_oihw, window_strides=(1, 1), padding=((1, 1), (1, 1)),
        feature_group_count=C, dimension_numbers=("NCHW", "OIHW", "NCHW"))
    y = y + dw_b.reshape(1, C, 1, 1)
    y = jnp.einsum("nchw,cd->ndhw", y, pw_w) + pw_b.reshape(1, -1, 1, 1)
    mean = jnp.mean(y, axis=(0, 2, 3), keepdims=True)
    var = jnp.mean((y - mean) ** 2, axis=(0, 2, 3), keepdims=True)
    y = (y - mean) * lax.rsqrt(var + eps) * gamma.reshape(1, -1, 1, 1) \
        + beta.reshape(1, -1, 1, 1)
    return jnp.maximum(y, 0.0)


if __name__ == "__main__":
    N, Cin, H, W = 2, 4, 16, 16
    Cout = 8

    key = jax.random.PRNGKey(0)
    k = jax.random.split(key, 7)
    x = jax.random.normal(k[0], (N, Cin, H, W), jnp.float32)

    dw_w = jax.random.normal(k[1], (3, 3, Cin), jnp.float32) * 0.2    # depthwise weight
    dw_b = jax.random.normal(k[2], (Cin,), jnp.float32) * 0.1         # depthwise bias
    pw_w = jax.random.normal(k[3], (Cin, Cout), jnp.float32) * 0.2    # pointwise weight
    pw_b = jax.random.normal(k[4], (Cout,), jnp.float32) * 0.1        # pointwise bias
    gamma = 1.0 + 0.1 * jax.random.normal(k[5], (Cout,), jnp.float32)  # BN weight
    beta = 0.1 * jax.random.normal(k[6], (Cout,), jnp.float32)         # BN bias
    params = (dw_w, dw_b, pw_w, pw_b, gamma, beta)

    out = depthwise_separable_conv(x, params)
    out = jax.block_until_ready(out)

    ref = jax.block_until_ready(reference(x, params))
    np.testing.assert_allclose(np.asarray(out), np.asarray(ref),
                               atol=2e-3, rtol=2e-3)

    print("KERNEL_OK")
</pallas_src>

<mosaic_0001>
module attributes {stable_mosaic.version = 11 : i64} {
  func.func @_dwsep_bn_relu_kernel(%arg0: i32, %arg1: memref<1x18x18x4xf32, #tpu.memory_space<vmem>>, %arg2: memref<3x3x4xf32, #tpu.memory_space<vmem>>, %arg3: memref<1x4xf32, #tpu.memory_space<vmem>>, %arg4: memref<8x4xf32, #tpu.memory_space<vmem>>, %arg5: memref<8x1xf32, #tpu.memory_space<vmem>>, %arg6: memref<8x1xf32, #tpu.memory_space<vmem>>, %arg7: memref<8x1xf32, #tpu.memory_space<vmem>>, %arg8: memref<2x8x256xf32, #tpu.memory_space<vmem>>) attributes {dimension_semantics = [#tpu.dimension_semantics<arbitrary>], iteration_bounds = array<i64: 2>, scalar_prefetch = 0 : i64, scratch_operands = 0 : i64, tpu.core_type = #tpu.core_type<tc>, window_params = [{transform_indices = @transform_0, window_bounds = array<i64: 1, 18, 18, 4>}, {pipeline_mode = #tpu.pipeline_mode<synchronous>, transform_indices = @transform_1, window_bounds = array<i64: 3, 3, 4>}, {pipeline_mode = #tpu.pipeline_mode<synchronous>, transform_indices = @transform_2, window_bounds = array<i64: 1, 4>}, {pipeline_mode = #tpu.pipeline_mode<synchronous>, transform_indices = @transform_3, window_bounds = array<i64: 8, 4>}, {pipeline_mode = #tpu.pipeline_mode<synchronous>, transform_indices = @transform_4, window_bounds = array<i64: 8, 1>}, {pipeline_mode = #tpu.pipeline_mode<synchronous>, transform_indices = @transform_5, window_bounds = array<i64: 8, 1>}, {pipeline_mode = #tpu.pipeline_mode<synchronous>, transform_indices = @transform_6, window_bounds = array<i64: 8, 1>}, {pipeline_mode = #tpu.pipeline_mode<synchronous>, transform_indices = @transform_7, window_bounds = array<i64: 2, 8, 256>}]} {
    %c0 = arith.constant 0 : index
    %c0_0 = arith.constant 0 : index
    %c0_1 = arith.constant 0 : index
    %c0_2 = arith.constant 0 : index
    %0 = vector.load %arg1[%c0, %c0_0, %c0_1, %c0_2] : memref<1x18x18x4xf32, #tpu.memory_space<vmem>>, vector<1x18x18x4xf32>
    %1 = vector.shape_cast %0 : vector<1x18x18x4xf32> to vector<18x18x4xf32>
    %c0_3 = arith.constant 0 : index
    %c0_4 = arith.constant 0 : index
    %c0_5 = arith.constant 0 : index
    %2 = vector.load %arg2[%c0_3, %c0_4, %c0_5] : memref<3x3x4xf32, #tpu.memory_space<vmem>>, vector<3x3x4xf32>
    %cst = arith.constant 0.000000e+00 : f32
    %3 = vector.broadcast %cst : f32 to vector<16x16x4xf32>
    %4 = vector.extract_strided_slice %1 {offsets = [0, 0, 0], sizes = [18, 16, 4], strides = [1, 1, 1]} : vector<18x18x4xf32> to vector<18x16x4xf32>
    %5 = vector.extract_strided_slice %4 {offsets = [0, 0, 0], sizes = [16, 16, 4], strides = [1, 1, 1]} : vector<18x16x4xf32> to vector<16x16x4xf32>
    %6 = vector.extract_strided_slice %2 {offsets = [0, 0, 0], sizes = [1, 1, 4], strides = [1, 1, 1]} : vector<3x3x4xf32> to vector<1x1x4xf32>
    %7 = vector.shape_cast %6 : vector<1x1x4xf32> to vector<4xf32>
    %8 = vector.shape_cast %7 : vector<4xf32> to vector<1x1x4xf32>
    %9 = vector.broadcast %8 : vector<1x1x4xf32> to vector<16x16x4xf32>
    %10 = arith.mulf %5, %9 : vector<16x16x4xf32>
    %11 = arith.addf %3, %10 : vector<16x16x4xf32>
    %12 = vector.extract_strided_slice %4 {offsets = [1, 0, 0], sizes = [16, 16, 4], strides = [1, 1, 1]} : vector<18x16x4xf32> to vector<16x16x4xf32>
    %13 = vector.extract_strided_slice %2 {offsets = [1, 0, 0], sizes = [1, 1, 4], strides = [1, 1, 1]} : vector<3x3x4xf32> to vector<1x1x4xf32>
    %14 = vector.shape_cast %13 : vector<1x1x4xf32> to vector<4xf32>
    %15 = vector.shape_cast %14 : vector<4xf32> to vector<1x1x4xf32>
    %16 = vector.broadcast %15 : vector<1x1x4xf32> to vector<16x16x4xf32>
    %17 = arith.mulf %12, %16 : vector<16x16x4xf32>
    %18 = arith.addf %11, %17 : vector<16x16x4xf32>
    %19 = vector.extract_strided_slice %4 {offsets = [2, 0, 0], sizes = [16, 16, 4], strides = [1, 1, 1]} : vector<18x16x4xf32> to vector<16x16x4xf32>
    %20 = vector.extract_strided_slice %2 {offsets = [2, 0, 0], sizes = [1, 1, 4], strides = [1, 1, 1]} : vector<3x3x4xf32> to vector<1x1x4xf32>
    %21 = vector.shape_cast %20 : vector<1x1x4xf32> to vector<4xf32>
    %22 = vector.shape_cast %21 : vector<4xf32> to vector<1x1x4xf32>
    %23 = vector.broadcast %22 : vector<1x1x4xf32> to vector<16x16x4xf32>
    %24 = arith.mulf %19, %23 : vector<16x16x4xf32>
    %25 = arith.addf %18, %24 : vector<16x16x4xf32>
    %26 = vector.extract_strided_slice %1 {offsets = [0, 1, 0], sizes = [18, 16, 4], strides = [1, 1, 1]} : vector<18x18x4xf32> to vector<18x16x4xf32>
    %27 = vector.extract_strided_slice %26 {offsets = [0, 0, 0], sizes = [16, 16, 4], strides = [1, 1, 1]} : vector<18x16x4xf32> to vector<16x16x4xf32>
    %28 = vector.extract_strided_slice %2 {offsets = [0, 1, 0], sizes = [1, 1, 4], strides = [1, 1, 1]} : vector<3x3x4xf32> to vector<1x1x4xf32>
    %29 = vector.shape_cast %28 : vector<1x1x4xf32> to vector<4xf32>
    %30 = vector.shape_cast %29 : vector<4xf32> to vector<1x1x4xf32>
    %31 = vector.broadcast %30 : vector<1x1x4xf32> to vector<16x16x4xf32>
    %32 = arith.mulf %27, %31 : vector<16x16x4xf32>
    %33 = arith.addf %25, %32 : vector<16x16x4xf32>
    %34 = vector.extract_strided_slice %26 {offsets = [1, 0, 0], sizes = [16, 16, 4], strides = [1, 1, 1]} : vector<18x16x4xf32> to vector<16x16x4xf32>
    %35 = vector.extract_strided_slice %2 {offsets = [1, 1, 0], sizes = [1, 1, 4], strides = [1, 1, 1]} : vector<3x3x4xf32> to vector<1x1x4xf32>
    %36 = vector.shape_cast %35 : vector<1x1x4xf32> to vector<4xf32>
    %37 = vector.shape_cast %36 : vector<4xf32> to vector<1x1x4xf32>
    %38 = vector.broadcast %37 : vector<1x1x4xf32> to vector<16x16x4xf32>
    %39 = arith.mulf %34, %38 : vector<16x16x4xf32>
    %40 = arith.addf %33, %39 : vector<16x16x4xf32>
    %41 = vector.extract_strided_slice %26 {offsets = [2, 0, 0], sizes = [16, 16, 4], strides = [1, 1, 1]} : vector<18x16x4xf32> to vector<16x16x4xf32>
    %42 = vector.extract_strided_slice %2 {offsets = [2, 1, 0], sizes = [1, 1, 4], strides = [1, 1, 1]} : vector<3x3x4xf32> to vector<1x1x4xf32>
    %43 = vector.shape_cast %42 : vector<1x1x4xf32> to vector<4xf32>
    %44 = vector.shape_cast %43 : vector<4xf32> to vector<1x1x4xf32>
    %45 = vector.broadcast %44 : vector<1x1x4xf32> to vector<16x16x4xf32>
    %46 = arith.mulf %41, %45 : vector<16x16x4xf32>
    %47 = arith.addf %40, %46 : vector<16x16x4xf32>
    %48 = vector.extract_strided_slice %1 {offsets = [0, 2, 0], sizes = [18, 16, 4], strides = [1, 1, 1]} : vector<18x18x4xf32> to vector<18x16x4xf32>
    %49 = vector.extract_strided_slice %48 {offsets = [0, 0, 0], sizes = [16, 16, 4], strides = [1, 1, 1]} : vector<18x16x4xf32> to vector<16x16x4xf32>
    %50 = vector.extract_strided_slice %2 {offsets = [0, 2, 0], sizes = [1, 1, 4], strides = [1, 1, 1]} : vector<3x3x4xf32> to vector<1x1x4xf32>
    %51 = vector.shape_cast %50 : vector<1x1x4xf32> to vector<4xf32>
    %52 = vector.shape_cast %51 : vector<4xf32> to vector<1x1x4xf32>
    %53 = vector.broadcast %52 : vector<1x1x4xf32> to vector<16x16x4xf32>
    %54 = arith.mulf %49, %53 : vector<16x16x4xf32>
    %55 = arith.addf %47, %54 : vector<16x16x4xf32>
    %56 = vector.extract_strided_slice %48 {offsets = [1, 0, 0], sizes = [16, 16, 4], strides = [1, 1, 1]} : vector<18x16x4xf32> to vector<16x16x4xf32>
    %57 = vector.extract_strided_slice %2 {offsets = [1, 2, 0], sizes = [1, 1, 4], strides = [1, 1, 1]} : vector<3x3x4xf32> to vector<1x1x4xf32>
    %58 = vector.shape_cast %57 : vector<1x1x4xf32> to vector<4xf32>
    %59 = vector.shape_cast %58 : vector<4xf32> to vector<1x1x4xf32>
    %60 = vector.broadcast %59 : vector<1x1x4xf32> to vector<16x16x4xf32>
    %61 = arith.mulf %56, %60 : vector<16x16x4xf32>
    %62 = arith.addf %55, %61 : vector<16x16x4xf32>
    %63 = vector.extract_strided_slice %48 {offsets = [2, 0, 0], sizes = [16, 16, 4], strides = [1, 1, 1]} : vector<18x16x4xf32> to vector<16x16x4xf32>
    %64 = vector.extract_strided_slice %2 {offsets = [2, 2, 0], sizes = [1, 1, 4], strides = [1, 1, 1]} : vector<3x3x4xf32> to vector<1x1x4xf32>
    %65 = vector.shape_cast %64 : vector<1x1x4xf32> to vector<4xf32>
    %66 = vector.shape_cast %65 : vector<4xf32> to vector<1x1x4xf32>
    %67 = vector.broadcast %66 : vector<1x1x4xf32> to vector<16x16x4xf32>
    %68 = arith.mulf %63, %67 : vector<16x16x4xf32>
    %69 = arith.addf %62, %68 : vector<16x16x4xf32>
    %c0_6 = arith.constant 0 : index
    %c0_7 = arith.constant 0 : index
    %70 = vector.load %arg3[%c0_6, %c0_7] : memref<1x4xf32, #tpu.memory_space<vmem>>, vector<1x4xf32>
    %71 = vector.shape_cast %70 : vector<1x4xf32> to vector<1x1x4xf32>
    %72 = vector.broadcast %71 : vector<1x1x4xf32> to vector<16x16x4xf32>
    %73 = arith.addf %69, %72 : vector<16x16x4xf32>
    %74 = vector.shape_cast %73 : vector<16x16x4xf32> to vector<256x4xf32>
    %c0_8 = arith.constant 0 : index
    %c0_9 = arith.constant 0 : index
    %75 = vector.load %arg4[%c0_8, %c0_9] : memref<8x4xf32, #tpu.memory_space<vmem>>, vector<8x4xf32>
    %cst_10 = arith.constant dense<0.000000e+00> : vector<8x256xf32>
    %76 = tpu.matmul %75, %74, %cst_10 {dimension_numbers = #tpu.dot_dimension_numbers<[1], [1], [0], [0], [0, 0, 1, 0], [], []>} : vector<8x4xf32>, vector<256x4xf32>, vector<8x256xf32> -> vector<8x256xf32>
    %c0_11 = arith.constant 0 : index
    %c0_12 = arith.constant 0 : index
    %77 = vector.load %arg5[%c0_11, %c0_12] : memref<8x1xf32, #tpu.memory_space<vmem>>, vector<8x1xf32>
    %78 = vector.broadcast %77 : vector<8x1xf32> to vector<8x256xf32>
    %79 = arith.addf %76, %78 : vector<8x256xf32>
    %80 = arith.index_cast %arg0 : i32 to index
    %c0_13 = arith.constant 0 : index
    %c0_14 = arith.constant 0 : index
    %81 = vector.load %arg8[%80, %c0_13, %c0_14] : memref<2x8x256xf32, #tpu.memory_space<vmem>>, vector<1x8x256xf32>
    %82 = vector.shape_cast %81 : vector<1x8x256xf32> to vector<8x256xf32>
    %83 = vector.shape_cast %79 : vector<8x256xf32> to vector<1x8x256xf32>
    tpu.vector_store %arg8[%80, %c0_13, %c0_14], %83 {strides = array<i32>} : memref<2x8x256xf32, #tpu.memory_space<vmem>>, vector<1x8x256xf32>,
    %c1_i32 = arith.constant 1 : i32
    %84 = arith.cmpi eq, %arg0, %c1_i32 : i32
    %85 = arith.extui %84 : i1 to i32
    %c0_i32 = arith.constant 0 : i32
    %86 = arith.cmpi ne, %85, %c0_i32 : i32
    scf.if %86 {
      %c0_15 = arith.constant 0 : index
      %c0_16 = arith.constant 0 : index
      %c0_17 = arith.constant 0 : index
      %87 = vector.load %arg8[%c0_15, %c0_16, %c0_17] : memref<2x8x256xf32, #tpu.memory_space<vmem>>, vector<2x8x256xf32>
      %cst_18 = arith.constant dense<0.000000e+00> : vector<2x8xf32>
      %88 = vector.multi_reduction <add>, %87, %cst_18 [2] : vector<2x8x256xf32> to vector<2x8xf32>
      %89 = vector.shape_cast %88 : vector<2x8xf32> to vector<2x8x1xf32>
      %cst_19 = arith.constant dense<0.000000e+00> : vector<8x1xf32>
      %90 = vector.multi_reduction <add>, %89, %cst_19 [0] : vector<2x8x1xf32> to vector<8x1xf32>
      %91 = vector.shape_cast %90 : vector<8x1xf32> to vector<1x8x1xf32>
      %cst_20 = arith.constant 0.001953125 : f32
      %92 = vector.broadcast %cst_20 : f32 to vector<1x8x1xf32>
      %93 = arith.mulf %91, %92 : vector<1x8x1xf32>
      %94 = vector.broadcast %93 : vector<1x8x1xf32> to vector<2x8x256xf32>
      %95 = arith.subf %87, %94 : vector<2x8x256xf32>
      %96 = arith.mulf %95, %95 : vector<2x8x256xf32>
      %cst_21 = arith.constant dense<0.000000e+00> : vector<2x8xf32>
      %97 = vector.multi_reduction <add>, %96, %cst_21 [2] : vector<2x8x256xf32> to vector<2x8xf32>
      %98 = vector.shape_cast %97 : vector<2x8xf32> to vector<2x8x1xf32>
      %cst_22 = arith.constant dense<0.000000e+00> : vector<8x1xf32>
      %99 = vector.multi_reduction <add>, %98, %cst_22 [0] : vector<2x8x1xf32> to vector<8x1xf32>
      %100 = vector.shape_cast %99 : vector<8x1xf32> to vector<1x8x1xf32>
      %cst_23 = arith.constant 0.001953125 : f32
      %101 = vector.broadcast %cst_23 : f32 to vector<1x8x1xf32>
      %102 = arith.mulf %100, %101 : vector<1x8x1xf32>
      %cst_24 = arith.constant 0.000000e+00 : f32
      %103 = vector.broadcast %cst_24 : f32 to vector<1x8x1xf32>
      %104 = arith.maximumf %102, %103 : vector<1x8x1xf32>
      %cst_25 = arith.constant 9.99999974E-6 : f32
      %105 = vector.broadcast %cst_25 : f32 to vector<1x8x1xf32>
      %106 = arith.addf %104, %105 : vector<1x8x1xf32>
      %107 = math.rsqrt %106 : vector<1x8x1xf32>
      %c0_26 = arith.constant 0 : index
      %c0_27 = arith.constant 0 : index
      %108 = vector.load %arg6[%c0_26, %c0_27] : memref<8x1xf32, #tpu.memory_space<vmem>>, vector<8x1xf32>
      %109 = vector.shape_cast %108 : vector<8x1xf32> to vector<1x8x1xf32>
      %110 = arith.mulf %109, %107 : vector<1x8x1xf32>
      %c0_28 = arith.constant 0 : index
      %c0_29 = arith.constant 0 : index
      %111 = vector.load %arg7[%c0_28, %c0_29] : memref<8x1xf32, #tpu.memory_space<vmem>>, vector<8x1xf32>
      %112 = vector.shape_cast %111 : vector<8x1xf32> to vector<1x8x1xf32>
      %113 = arith.mulf %93, %110 : vector<1x8x1xf32>
      %114 = arith.subf %112, %113 : vector<1x8x1xf32>
      %115 = vector.broadcast %110 : vector<1x8x1xf32> to vector<2x8x256xf32>
      %116 = arith.mulf %87, %115 : vector<2x8x256xf32>
      %117 = vector.broadcast %114 : vector<1x8x1xf32> to vector<2x8x256xf32>
      %118 = arith.addf %116, %117 : vector<2x8x256xf32>
      %cst_30 = arith.constant 0.000000e+00 : f32
      %119 = vector.broadcast %cst_30 : f32 to vector<2x8x256xf32>
      %120 = arith.maximumf %118, %119 : vector<2x8x256xf32>
      %c0_31 = arith.constant 0 : index
      %c0_32 = arith.constant 0 : index
      %c0_33 = arith.constant 0 : index
      %121 = vector.load %arg8[%c0_31, %c0_32, %c0_33] : memref<2x8x256xf32, #tpu.memory_space<vmem>>, vector<2x8x256xf32>
      tpu.vector_store %arg8[%c0_31, %c0_32, %c0_33], %120 {strides = array<i32>} : memref<2x8x256xf32, #tpu.memory_space<vmem>>, vector<2x8x256xf32>,
    } else {
    }
    return
  }
  func.func @transform_0(%arg0: i32) -> (i32, i32, i32, i32) {
    %c0_i32 = arith.constant 0 : i32
    %c0_i32_0 = arith.constant 0 : i32
    %c0_i32_1 = arith.constant 0 : i32
    %c0_i32_2 = arith.constant 0 : i32
    return %arg0, %c0_i32, %c0_i32_0, %c0_i32_1 : i32, i32, i32, i32
  }
  func.func @transform_1(%arg0: i32) -> (i32, i32, i32) {
    %c0_i32 = arith.constant 0 : i32
    %c0_i32_0 = arith.constant 0 : i32
    %c0_i32_1 = arith.constant 0 : i32
    %c0_i32_2 = arith.constant 0 : i32
    return %c0_i32, %c0_i32_0, %c0_i32_1 : i32, i32, i32
  }
  func.func @transform_2(%arg0: i32) -> (i32, i32) {
    %c0_i32 = arith.constant 0 : i32
    %c0_i32_0 = arith.constant 0 : i32
    %c0_i32_1 = arith.constant 0 : i32
    return %c0_i32, %c0_i32_0 : i32, i32
  }
  func.func @transform_3(%arg0: i32) -> (i32, i32) {
    %c0_i32 = arith.constant 0 : i32
    %c0_i32_0 = arith.constant 0 : i32
    %c0_i32_1 = arith.constant 0 : i32
    return %c0_i32, %c0_i32_0 : i32, i32
  }
  func.func @transform_4(%arg0: i32) -> (i32, i32) {
    %c0_i32 = arith.constant 0 : i32
    %c0_i32_0 = arith.constant 0 : i32
    %c0_i32_1 = arith.constant 0 : i32
    return %c0_i32, %c0_i32_0 : i32, i32
  }
  func.func @transform_5(%arg0: i32) -> (i32, i32) {
    %c0_i32 = arith.constant 0 : i32
    %c0_i32_0 = arith.constant 0 : i32
    %c0_i32_1 = arith.constant 0 : i32
    return %c0_i32, %c0_i32_0 : i32, i32
  }
  func.func @transform_6(%arg0: i32) -> (i32, i32) {
    %c0_i32 = arith.constant 0 : i32
    %c0_i32_0 = arith.constant 0 : i32
    %c0_i32_1 = arith.constant 0 : i32
    return %c0_i32, %c0_i32_0 : i32, i32
  }
  func.func @transform_7(%arg0: i32) -> (i32, i32, i32) {
    %c0_i32 = arith.constant 0 : i32
    %c0_i32_0 = arith.constant 0 : i32
    %c0_i32_1 = arith.constant 0 : i32
    %c0_i32_2 = arith.constant 0 : i32
    return %c0_i32, %c0_i32_0, %c0_i32_1 : i32, i32, i32
  }
}

</mosaic_0001>

<llo_original>
// kernel: tpu_custom_call.1
$region0: #{tpu_custom_call.1}
  #allocation0 [shape = 'u32[]', space=smem, size = 0x4, offset = 0x4, fixed_abs, tag = 'smem constant byte address 0x4 - core index']
  #allocation1 [shape = 'u32[144,128]{1,0:T(1,128)}', space=vmem, size = 0x12000, scoped, tag = 'internal scratch']
  %s0 = inlined_call_operand.vmem [shape: f32[2,18,18,4], index: 0, kind: input, shape index: {}]
  %s1 = inlined_call_operand.vmem [shape: f32[3,3,4], index: 1, kind: input, shape index: {}]
  %s2 = inlined_call_operand.vmem [shape: f32[1,4], index: 2, kind: input, shape index: {}]
  %s3 = inlined_call_operand.vmem [shape: f32[8,4], index: 3, kind: input, shape index: {}]
  %s4 = inlined_call_operand.vmem [shape: f32[8,1], index: 4, kind: input, shape index: {}]
  %s5 = inlined_call_operand.vmem [shape: f32[8,1], index: 5, kind: input, shape index: {}]
  %s6 = inlined_call_operand.vmem [shape: f32[8,1], index: 6, kind: input, shape index: {}]
  %s7 = inlined_call_operand.hbm [shape: f32[2,8,256], index: 7, kind: output, shape index: {}]
  %s8 = sld [smem:[#allocation0]]
  $region65: #{tpu_custom_call.1} parent=0
    _
  %s10 = ssub.s32 1, %s8
  %s11 = scalar_select 0, %s10, %s8
  $region1: #{tpu_custom_call.1} parent=0
    #allocation2 [shape = 'u8[16384]{0}', space=vmem, size = 0x4000, scoped, tag = 'output window, operand 0, single buffered']
    #allocation3 [shape = 's32[2]{0}', space=sflag, size = 0x8, scoped, tag = 'scoped memory for tpu_custom_call.1']
    %12 = vsyncpa [#allocation3], 0
    loop: start=0, step=1, limit=4
    $region2: #{tpu_custom_call.1} parent=1 // loop_pre_header
      _
    $region3: #{tpu_custom_call.1} parent=1 // loop_header
      %s14 = sphi 0, %s18
      %p15 = scmp.ge.s32.totalorder %s14, 4
      %s24 = sphi 0, %s26
      %s27 = sphi 0, %s24
      %s28 = sphi 0, %s27
      %s44 = sphi 0, %s28
      %s48 = sphi 0, %s48
      %s50 = sphi 0, %s48
      %s51 = sphi 0, %s50
      %s65 = sphi 0, %s51
      %s69 = sphi 0, %s69
      %s71 = sphi 0, %s69
      %s72 = sphi 0, %s71
      %s86 = sphi 0, %s72
      %s90 = sphi 0, %s90
      %s92 = sphi 0, %s90
      %s93 = sphi 0, %s92
      %s107 = sphi 0, %s93
      %s111 = sphi 0, %s111
      %s113 = sphi 0, %s111
      %s114 = sphi 0, %s113
      %s128 = sphi 0, %s114
      %s132 = sphi 0, %s132
      %s134 = sphi 0, %s132
      %s135 = sphi 0, %s134
      %s149 = sphi 0, %s135
      %s153 = sphi 0, %s153
      %s155 = sphi 0, %s153
      %s156 = sphi 0, %s155
      %s170 = sphi 0, %s156
      %s174 = sphi 0, %s174
      %s176 = sphi 0, %s174
      %s177 = sphi 0, %s176
      %s191 = sphi 0, %s177
    $region4: #{tpu_custom_call.1} parent=1 // loop_header_branch
      %17 = sbr.rel (%p15) target = $region8
    $region5: #{tpu_custom_call.1} parent=1 // loop_body
      %s19 = ssub.s32 %s14, 1
      %s20 = ssub.s32 %s14, 2
      %s21 = sadd.s32 %s14, 1
      %s22 = ssub.s32 %s14, %s21
      %p23 = scmp.eq.s32.totalorder %s22, 0
      %s25 = sadd.s32 %s24, 1
      %s26 = scalar_select %p23, %s24, %s25
      %p29 = pneg %p23
      %p30 = scmp.eq.s32.totalorder %s14, 1
      %p31 = por %p29, %p30
      %p32 = scmp.ne.s32.totalorder %s24, %s27
      %p33 = scmp.eq.s32.totalorder %s14, 0
      %p34 = por %p32, %p33
      %p35 = scmp.ne.s32.totalorder %s24, %s27
      %p36 = scmp.eq.s32.totalorder %s19, 1
      %p37 = por %p35, %p36
      %p38 = scmp.ne.s32.totalorder %s27, %s28
      %p39 = scmp.eq.s32.totalorder %s19, 0
      %p40 = por %p38, %p39
      %p41 = scmp.ne.s32.totalorder %s27, %s28
      %p42 = scmp.eq.s32.totalorder %s20, 1
      %p43 = por %p41, %p42
      %p45 = scmp.ne.s32.totalorder %s28, %s44
      %p46 = scmp.eq.s32.totalorder %s20, 0
      %p47 = por %p45, %p46
      %s49 = sadd.s32 %s48, 1
      %p52 = scmp.eq.s32.totalorder %s14, 1
      %p53 = scmp.ne.s32.totalorder %s48, %s50
      %p54 = scmp.eq.s32.totalorder %s14, 0
      %p55 = por %p53, %p54
      %p56 = scmp.ne.s32.totalorder %s48, %s50
      %p57 = scmp.eq.s32.totalorder %s19, 1
      %p58 = por %p56, %p57
      %p59 = scmp.ne.s32.totalorder %s50, %s51
      %p60 = scmp.eq.s32.totalorder %s19, 0
      %p61 = por %p59, %p60
      %p62 = scmp.ne.s32.totalorder %s50, %s51
      %p63 = scmp.eq.s32.totalorder %s20, 1
      %p64 = por %p62, %p63
      %p66 = scmp.ne.s32.totalorder %s51, %s65
      %p67 = scmp.eq.s32.totalorder %s20, 0
      %p68 = por %p66, %p67
      %s70 = sadd.s32 %s69, 1
      %p73 = scmp.eq.s32.totalorder %s14, 1
      %p74 = scmp.ne.s32.totalorder %s69, %s71
      %p75 = scmp.eq.s32.totalorder %s14, 0
      %p76 = por %p74, %p75
      %p77 = scmp.ne.s32.totalorder %s69, %s71
      %p78 = scmp.eq.s32.totalorder %s19, 1
      %p79 = por %p77, %p78
      %p80 = scmp.ne.s32.totalorder %s71, %s72
      %p81 = scmp.eq.s32.totalorder %s19, 0
      %p82 = por %p80, %p81
      %p83 = scmp.ne.s32.totalorder %s71, %s72
      %p84 = scmp.eq.s32.totalorder %s20, 1
      %p85 = por %p83, %p84
      %p87 = scmp.ne.s32.totalorder %s72, %s86
      %p88 = scmp.eq.s32.totalorder %s20, 0
      %p89 = por %p87, %p88
      %s91 = sadd.s32 %s90, 1
      %p94 = scmp.eq.s32.totalorder %s14, 1
      %p95 = scmp.ne.s32.totalorder %s90, %s92
      %p96 = scmp.eq.s32.totalorder %s14, 0
      %p97 = por %p95, %p96
      %p98 = scmp.ne.s32.totalorder %s90, %s92
      %p99 = scmp.eq.s32.totalorder %s19, 1
      %p100 = por %p98, %p99
      %p101 = scmp.ne.s32.totalorder %s92, %s93
      %p102 = scmp.eq.s32.totalorder %s19, 0
      %p103 = por %p101, %p102
      %p104 = scmp.ne.s32.totalorder %s92, %s93
      %p105 = scmp.eq.s32.totalorder %s20, 1
      %p106 = por %p104, %p105
      %p108 = scmp.ne.s32.totalorder %s93, %s107
      %p109 = scmp.eq.s32.totalorder %s20, 0
      %p110 = por %p108, %p109
      %s112 = sadd.s32 %s111, 1
      %p115 = scmp.eq.s32.totalorder %s14, 1
      %p116 = scmp.ne.s32.totalorder %s111, %s113
      %p117 = scmp.eq.s32.totalorder %s14, 0
      %p118 = por %p116, %p117
      %p119 = scmp.ne.s32.totalorder %s111, %s113
      %p120 = scmp.eq.s32.totalorder %s19, 1
      %p121 = por %p119, %p120
      %p122 = scmp.ne.s32.totalorder %s113, %s114
      %p123 = scmp.eq.s32.totalorder %s19, 0
      %p124 = por %p122, %p123
      %p125 = scmp.ne.s32.totalorder %s113, %s114
      %p126 = scmp.eq.s32.totalorder %s20, 1
      %p127 = por %p125, %p126
      %p129 = scmp.ne.s32.totalorder %s114, %s128
      %p130 = scmp.eq.s32.totalorder %s20, 0
      %p131 = por %p129, %p130
      %s133 = sadd.s32 %s132, 1
      %p136 = scmp.eq.s32.totalorder %s14, 1
      %p137 = scmp.ne.s32.totalorder %s132, %s134
      %p138 = scmp.eq.s32.totalorder %s14, 0
      %p139 = por %p137, %p138
      %p140 = scmp.ne.s32.totalorder %s132, %s134
      %p141 = scmp.eq.s32.totalorder %s19, 1
      %p142 = por %p140, %p141
      %p143 = scmp.ne.s32.totalorder %s134, %s135
      %p144 = scmp.eq.s32.totalorder %s19, 0
      %p145 = por %p143, %p144
      %p146 = scmp.ne.s32.totalorder %s134, %s135
      %p147 = scmp.eq.s32.totalorder %s20, 1
      %p148 = por %p146, %p147
      %p150 = scmp.ne.s32.totalorder %s135, %s149
      %p151 = scmp.eq.s32.totalorder %s20, 0
      %p152 = por %p150, %p151
      %s154 = sadd.s32 %s153, 1
      %p157 = scmp.eq.s32.totalorder %s14, 1
      %p158 = scmp.ne.s32.totalorder %s153, %s155
      %p159 = scmp.eq.s32.totalorder %s14, 0
      %p160 = por %p158, %p159
      %p161 = scmp.ne.s32.totalorder %s153, %s155
      %p162 = scmp.eq.s32.totalorder %s19, 1
      %p163 = por %p161, %p162
      %p164 = scmp.ne.s32.totalorder %s155, %s156
      %p165 = scmp.eq.s32.totalorder %s19, 0
      %p166 = por %p164, %p165
      %p167 = scmp.ne.s32.totalorder %s155, %s156
      %p168 = scmp.eq.s32.totalorder %s20, 1
      %p169 = por %p167, %p168
      %p171 = scmp.ne.s32.totalorder %s156, %s170
      %p172 = scmp.eq.s32.totalorder %s20, 0
      %p173 = por %p171, %p172
      %s175 = sadd.s32 %s174, 1
      %p178 = scmp.eq.s32.totalorder %s14, 1
      %p179 = scmp.ne.s32.totalorder %s174, %s176
      %p180 = scmp.eq.s32.totalorder %s14, 0
      %p181 = por %p179, %p180
      %p182 = scmp.ne.s32.totalorder %s174, %s176
      %p183 = scmp.eq.s32.totalorder %s19, 1
      %p184 = por %p182, %p183
      %p185 = scmp.ne.s32.totalorder %s176, %s177
      %p186 = scmp.eq.s32.totalorder %s19, 0
      %p187 = por %p185, %p186
      %p188 = scmp.ne.s32.totalorder %s176, %s177
      %p189 = scmp.eq.s32.totalorder %s20, 1
      %p190 = por %p188, %p189
      %p192 = scmp.ne.s32.totalorder %s177, %s191
      %p193 = scmp.eq.s32.totalorder %s20, 0
      %p194 = por %p192, %p193
      %p195 = scmp.le.s32.totalorder 1, %s14
      %p196 = scmp.lt.s32.totalorder %s14, 3
      %p197 = pnand %p195, %p196
      %p198 = pneg %p197
      // Predicated region
      $region9: #{tpu_custom_call.1} parent=5 // pred_check
        _
      $region10: #{tpu_custom_call.1} parent=5 // pred_check_branch
        %200 = sbr.rel (%p197) target = $region12
      $region11: #{tpu_custom_call.1} parent=5 // pred_region
        %s201 = ssub.s32 %s14, 1
        // Predicated region
        $region13: #{tpu_custom_call.1} parent=11 // pred_check
          %p202 = pneg %p61
        $region14: #{tpu_custom_call.1} parent=11 // pred_check_branch
          %204 = sbr.rel (%p202) target = $region16
        $region15: #{tpu_custom_call.1} parent=11 // pred_region
          _
        $region16: #{tpu_custom_call.1} parent=11 // pred_fallthru
          _
        // Predicated region
        $region17: #{tpu_custom_call.1} parent=11 // pred_check
          %p205 = pneg %p82
        $region18: #{tpu_custom_call.1} parent=11 // pred_check_branch
          %207 = sbr.rel (%p205) target = $region20
        $region19: #{tpu_custom_call.1} parent=11 // pred_region
          _
        $region20: #{tpu_custom_call.1} parent=11 // pred_fallthru
          _
        // Predicated region
        $region21: #{tpu_custom_call.1} parent=11 // pred_check
          %p208 = pneg %p103
        $region22: #{tpu_custom_call.1} parent=11 // pred_check_branch
          %210 = sbr.rel (%p208) target = $region24
        $region23: #{tpu_custom_call.1} parent=11 // pred_region
          _
        $region24: #{tpu_custom_call.1} parent=11 // pred_fallthru
          _
        // Predicated region
        $region25: #{tpu_custom_call.1} parent=11 // pred_check
          %p211 = pneg %p124
        $region26: #{tpu_custom_call.1} parent=11 // pred_check_branch
          %213 = sbr.rel (%p211) target = $region28
        $region27: #{tpu_custom_call.1} parent=11 // pred_region
          _
        $region28: #{tpu_custom_call.1} parent=11 // pred_fallthru
          _
        // Predicated region
        $region29: #{tpu_custom_call.1} parent=11 // pred_check
          %p214 = pneg %p145
        $region30: #{tpu_custom_call.1} parent=11 // pred_check_branch
          %216 = sbr.rel (%p214) target = $region32
        $region31: #{tpu_custom_call.1} parent=11 // pred_region
          _
        $region32: #{tpu_custom_call.1} parent=11 // pred_fallthru
          _
        // Predicated region
        $region33: #{tpu_custom_call.1} parent=11 // pred_check
          %p217 = pneg %p166
        $region34: #{tpu_custom_call.1} parent=11 // pred_check_branch
          %219 = sbr.rel (%p217) target = $region36
        $region35: #{tpu_custom_call.1} parent=11 // pred_region
          _
        $region36: #{tpu_custom_call.1} parent=11 // pred_fallthru
          _
      $region12: #{tpu_custom_call.1} parent=5 // pred_fallthru
        _
      %p220 = scmp.lt.s32.totalorder %s14, 2
      // Predicated region
      $region37: #{tpu_custom_call.1} parent=5 // pred_check
        %p221 = pneg %p220
      $region38: #{tpu_custom_call.1} parent=5 // pred_check_branch
        %223 = sbr.rel (%p221) target = $region40
      $region39: #{tpu_custom_call.1} parent=5 // pred_region
        // Predicated region
        $region41: #{tpu_custom_call.1} parent=39 // pred_check
          %p224 = pneg %p34
        $region42: #{tpu_custom_call.1} parent=39 // pred_check_branch
          %226 = sbr.rel (%p224) target = $region44
        $region43: #{tpu_custom_call.1} parent=39 // pred_region
          %p227 = scmp.lt.s32.totalorder %s14, 1
          %s228 = scalar_select %p227, %s14, 1
          %s229 = smul.addr %s228, 54
          %s230 = smul.addr %s229, 8
          %s231 = scalar_lea.vmem %s0, %s230
        $region44: #{tpu_custom_call.1} parent=39 // pred_fallthru
          _
      $region40: #{tpu_custom_call.1} parent=5 // pred_fallthru
        _
      %p232 = scmp.le.s32.totalorder 1, %s14
      %p233 = scmp.lt.s32.totalorder %s14, 3
      %p234 = pnand %p232, %p233
      %p235 = pneg %p234
      // Predicated region
      $region45: #{tpu_custom_call.1} parent=5 // pred_check
        _
      $region46: #{tpu_custom_call.1} parent=5 // pred_check_branch
        %237 = sbr.rel (%p234) target = $region48
      $region47: #{tpu_custom_call.1} parent=5 // pred_region
        %s238 = ssub.s32 %s14, 1
        %p239 = scmp.lt.s32.totalorder %s19, 1
        %s240 = scalar_select %p239, %s19, 1
        %s241 = smul.addr %s240, 54
        %s242 = smul.addr %s241, 8
        %s243 = scalar_lea.vmem %s0, %s242
        %p244 = pneg %p40
        %p245 = pneg %p37
        %p246 = pneg %p61
        %p247 = pneg %p58
        %p248 = pneg %p82
        %p249 = pneg %p79
        %p250 = pneg %p103
        %p251 = pneg %p100
        %p252 = pneg %p124
        %p253 = pneg %p121
        %p254 = pneg %p145
        %p255 = pneg %p142
        %p256 = pneg %p166
        %p257 = pneg %p163
        %p258 = pneg %p187
        %p259 = pneg %p184
        %p260 = scmp.lt.s32.totalorder %s19, 1
        %s261 = scalar_select %p260, %s19, 1
        %s262 = smul.addr %s261, 54
        %s263 = smul.addr %s262, 8
        %s264 = scalar_lea.vmem %s0, %s263
        %v265 = vld [vmem:[%s264] sm:$0xff]
        %v266 = vld [vmem:[%s264 + $0x8] sm:$0xff]
        %v267 = vld [vmem:[%s264 + $0x10] sm:$0x3]
        %v268 = vld [vmem:[%s264 + $0x18] sm:$0xff]
        %v269 = vld [vmem:[%s264 + $0x20] sm:$0xff]
        %v270 = vld [vmem:[%s264 + $0x28] sm:$0x3]
        %v271 = vld [vmem:[%s264 + $0x30] sm:$0xff]
        %v272 = vld [vmem:[%s264 + $0x38] sm:$0xff]
        %v273 = vld [vmem:[%s264 + $0x40] sm:$0x3]
        %v274 = vld [vmem:[%s264 + $0x48] sm:$0xff]
        %v275 = vld [vmem:[%s264 + $0x50] sm:$0xff]
        %v276 = vld [vmem:[%s264 + $0x58] sm:$0x3]
        %v277 = vld [vmem:[%s264 + $0x60] sm:$0xff]
        %v278 = vld [vmem:[%s264 + $0x68] sm:$0xff]
        %v279 = vld [vmem:[%s264 + $0x70] sm:$0x3]
        %v280 = vld [vmem:[%s264 + $0x78] sm:$0xff]
        %v281 = vld [vmem:[%s264 + $0x80] sm:$0xff]
        %v282 = vld [vmem:[%s264 + $0x88] sm:$0x3]
        %v283 = vld [vmem:[%s264 + $0x90] sm:$0xff]
        %v284 = vld [vmem:[%s264 + $0x98] sm:$0xff]
        %v285 = vld [vmem:[%s264 + $0xa0] sm:$0x3]
        %v286 = vld [vmem:[%s264 + $0xa8] sm:$0xff]
        %v287 = vld [vmem:[%s264 + $0xb0] sm:$0xff]
        %v288 = vld [vmem:[%s264 + $0xb8] sm:$0x3]
        %v289 = vld [vmem:[%s264 + $0xc0] sm:$0xff]
        %v290 = vld [vmem:[%s264 + $0xc8] sm:$0xff]
        %v291 = vld [vmem:[%s264 + $0xd0] sm:$0x3]
        %v292 = vld [vmem:[%s264 + $0xd8] sm:$0xff]
        %v293 = vld [vmem:[%s264 + $0xe0] sm:$0xff]
        %v294 = vld [vmem:[%s264 + $0xe8] sm:$0x3]
        %v295 = vld [vmem:[%s264 + $0xf0] sm:$0xff]
        %v296 = vld [vmem:[%s264 + $0xf8] sm:$0xff]
        %v297 = vld [vmem:[%s264 + $0x100] sm:$0x3]
        %v298 = vld [vmem:[%s264 + $0x108] sm:$0xff]
        %v299 = vld [vmem:[%s264 + $0x110] sm:$0xff]
        %v300 = vld [vmem:[%s264 + $0x118] sm:$0x3]
        %v301 = vld [vmem:[%s264 + $0x120] sm:$0xff]
        %v302 = vld [vmem:[%s264 + $0x128] sm:$0xff]
        %v303 = vld [vmem:[%s264 + $0x130] sm:$0x3]
        %v304 = vld [vmem:[%s264 + $0x138] sm:$0xff]
        %v305 = vld [vmem:[%s264 + $0x140] sm:$0xff]
        %v306 = vld [vmem:[%s264 + $0x148] sm:$0x3]
        %v307 = vld [vmem:[%s264 + $0x150] sm:$0xff]
        %v308 = vld [vmem:[%s264 + $0x158] sm:$0xff]
        %v309 = vld [vmem:[%s264 + $0x160] sm:$0x3]
        %v310 = vld [vmem:[%s264 + $0x168] sm:$0xff]
        %v311 = vld [vmem:[%s264 + $0x170] sm:$0xff]
        %v312 = vld [vmem:[%s264 + $0x178] sm:$0x3]
        %v313 = vld [vmem:[%s264 + $0x180] sm:$0xff]
        %v314 = vld [vmem:[%s264 + $0x188] sm:$0xff]
        %v315 = vld [vmem:[%s264 + $0x190] sm:$0x3]
        %v316 = vld [vmem:[%s264 + $0x198] sm:$0xff]
        %v317 = vld [vmem:[%s264 + $0x1a0] sm:$0xff]
        %v318 = vld [vmem:[%s264 + $0x1a8] sm:$0x3]
        %v319 = vld [vmem:[%s1] sm:$0x7]
        %v320 = vld [vmem:[%s1 + $0x4] sm:$0x7]
        %v321 = vld [vmem:[%s1 + $0x8] sm:$0x7]
        %v322 = vlaneseq
        %v323 = vshrl.u32 %v322, 7
        %v324 = vsub.s32 0, %v323
        %v325 = vrot.slane %v319, %v324
        %v326 = vmul.f32 %v265, %v325
        %v327 = vmul.f32 %v266, %v325
        %v328 = vmul.f32 %v268, %v325
        %v329 = vmul.f32 %v269, %v325
        %v330 = vmul.f32 %v271, %v325
        %v331 = vmul.f32 %v272, %v325
        %v332 = vmul.f32 %v274, %v325
        %v333 = vmul.f32 %v275, %v325
        %v334 = vmul.f32 %v277, %v325
        %v335 = vmul.f32 %v278, %v325
        %v336 = vmul.f32 %v280, %v325
        %v337 = vmul.f32 %v281, %v325
        %v338 = vmul.f32 %v283, %v325
        %v339 = vmul.f32 %v284, %v325
        %v340 = vmul.f32 %v286, %v325
        %v341 = vmul.f32 %v287, %v325
        %v342 = vmul.f32 %v289, %v325
        %v343 = vmul.f32 %v290, %v325
        %v344 = vmul.f32 %v292, %v325
        %v345 = vmul.f32 %v293, %v325
        %v346 = vmul.f32 %v295, %v325
        %v347 = vmul.f32 %v296, %v325
        %v348 = vmul.f32 %v298, %v325
        %v349 = vmul.f32 %v299, %v325
        %v350 = vmul.f32 %v301, %v325
        %v351 = vmul.f32 %v302, %v325
        %v352 = vmul.f32 %v304, %v325
        %v353 = vmul.f32 %v305, %v325
        %v354 = vmul.f32 %v307, %v325
        %v355 = vmul.f32 %v308, %v325
        %v356 = vmul.f32 %v310, %v325
        %v357 = vmul.f32 %v311, %v325
        %v358 = vadd.f32 %v326, 0.0
        %v359 = vadd.f32 %v327, 0.0
        %v360 = vadd.f32 %v328, 0.0
        %v361 = vadd.f32 %v329, 0.0
        %v362 = vadd.f32 %v330, 0.0
        %v363 = vadd.f32 %v331, 0.0
        %v364 = vadd.f32 %v332, 0.0
        %v365 = vadd.f32 %v333, 0.0
        %v366 = vadd.f32 %v334, 0.0
        %v367 = vadd.f32 %v335, 0.0
        %v368 = vadd.f32 %v336, 0.0
        %v369 = vadd.f32 %v337, 0.0
        %v370 = vadd.f32 %v338, 0.0
        %v371 = vadd.f32 %v339, 0.0
        %v372 = vadd.f32 %v340, 0.0
        %v373 = vadd.f32 %v341, 0.0
        %v374 = vadd.f32 %v342, 0.0
        %v375 = vadd.f32 %v343, 0.0
        %v376 = vadd.f32 %v344, 0.0
        %v377 = vadd.f32 %v345, 0.0
        %v378 = vadd.f32 %v346, 0.0
        %v379 = vadd.f32 %v347, 0.0
        %v380 = vadd.f32 %v348, 0.0
        %v381 = vadd.f32 %v349, 0.0
        %v382 = vadd.f32 %v350, 0.0
        %v383 = vadd.f32 %v351, 0.0
        %v384 = vadd.f32 %v352, 0.0
        %v385 = vadd.f32 %v353, 0.0
        %v386 = vadd.f32 %v354, 0.0
        %v387 = vadd.f32 %v355, 0.0
        %v388 = vadd.f32 %v356, 0.0
        %v389 = vadd.f32 %v357, 0.0
        %v390 = vlaneseq
        %v391 = vshrl.u32 %v390, 7
        %v392 = vsub.s32 0, %v391
        %v393 = vrot.slane %v320, %v392
        %v394 = vmul.f32 %v268, %v393
        %v395 = vmul.f32 %v269, %v393
        %v396 = vmul.f32 %v271, %v393
        %v397 = vmul.f32 %v272, %v393
        %v398 = vmul.f32 %v274, %v393
        %v399 = vmul.f32 %v275, %v393
        %v400 = vmul.f32 %v277, %v393
        %v401 = vmul.f32 %v278, %v393
        %v402 = vmul.f32 %v280, %v393
        %v403 = vmul.f32 %v281, %v393
        %v404 = vmul.f32 %v283, %v393
        %v405 = vmul.f32 %v284, %v393
        %v406 = vmul.f32 %v286, %v393
        %v407 = vmul.f32 %v287, %v393
        %v408 = vmul.f32 %v289, %v393
        %v409 = vmul.f32 %v290, %v393
        %v410 = vmul.f32 %v292, %v393
        %v411 = vmul.f32 %v293, %v393
        %v412 = vmul.f32 %v295, %v393
        %v413 = vmul.f32 %v296, %v393
        %v414 = vmul.f32 %v298, %v393
        %v415 = vmul.f32 %v299, %v393
        %v416 = vmul.f32 %v301, %v393
        %v417 = vmul.f32 %v302, %v393
        %v418 = vmul.f32 %v304, %v393
        %v419 = vmul.f32 %v305, %v393
        %v420 = vmul.f32 %v307, %v393
        %v421 = vmul.f32 %v308, %v393
        %v422 = vmul.f32 %v310, %v393
        %v423 = vmul.f32 %v311, %v393
        %v424 = vmul.f32 %v313, %v393
        %v425 = vmul.f32 %v314, %v393
        %v426 = vadd.f32 %v358, %v394
        %v427 = vadd.f32 %v359, %v395
        %v428 = vadd.f32 %v360, %v396
        %v429 = vadd.f32 %v361, %v397
        %v430 = vadd.f32 %v362, %v398
        %v431 = vadd.f32 %v363, %v399
        %v432 = vadd.f32 %v364, %v400
        %v433 = vadd.f32 %v365, %v401
        %v434 = vadd.f32 %v366, %v402
        %v435 = vadd.f32 %v367, %v403
        %v436 = vadd.f32 %v368, %v404
        %v437 = vadd.f32 %v369, %v405
        %v438 = vadd.f32 %v370, %v406
        %v439 = vadd.f32 %v371, %v407
        %v440 = vadd.f32 %v372, %v408
        %v441 = vadd.f32 %v373, %v409
        %v442 = vadd.f32 %v374, %v410
        %v443 = vadd.f32 %v375, %v411
        %v444 = vadd.f32 %v376, %v412
        %v445 = vadd.f32 %v377, %v413
        %v446 = vadd.f32 %v378, %v414
        %v447 = vadd.f32 %v379, %v415
        %v448 = vadd.f32 %v380, %v416
        %v449 = vadd.f32 %v381, %v417
        %v450 = vadd.f32 %v382, %v418
        %v451 = vadd.f32 %v383, %v419
        %v452 = vadd.f32 %v384, %v420
        %v453 = vadd.f32 %v385, %v421
        %v454 = vadd.f32 %v386, %v422
        %v455 = vadd.f32 %v387, %v423
        %v456 = vadd.f32 %v388, %v424
        %v457 = vadd.f32 %v389, %v425
        %v458 = vlaneseq
        %v459 = vshrl.u32 %v458, 7
        %v460 = vsub.s32 0, %v459
        %v461 = vrot.slane %v321, %v460
        %v462 = vmul.f32 %v271, %v461
        %v463 = vmul.f32 %v272, %v461
        %v464 = vmul.f32 %v274, %v461
        %v465 = vmul.f32 %v275, %v461
        %v466 = vmul.f32 %v277, %v461
        %v467 = vmul.f32 %v278, %v461
        %v468 = vmul.f32 %v280, %v461
        %v469 = vmul.f32 %v281, %v461
        %v470 = vmul.f32 %v283, %v461
        %v471 = vmul.f32 %v284, %v461
        %v472 = vmul.f32 %v286, %v461
        %v473 = vmul.f32 %v287, %v461
        %v474 = vmul.f32 %v289, %v461
        %v475 = vmul.f32 %v290, %v461
        %v476 = vmul.f32 %v292, %v461
        %v477 = vmul.f32 %v293, %v461
        %v478 = vmul.f32 %v295, %v461
        %v479 = vmul.f32 %v296, %v461
        %v480 = vmul.f32 %v298, %v461
        %v481 = vmul.f32 %v299, %v461
        %v482 = vmul.f32 %v301, %v461
        %v483 = vmul.f32 %v302, %v461
        %v484 = vmul.f32 %v304, %v461
        %v485 = vmul.f32 %v305, %v461
        %v486 = vmul.f32 %v307, %v461
        %v487 = vmul.f32 %v308, %v461
        %v488 = vmul.f32 %v310, %v461
        %v489 = vmul.f32 %v311, %v461
        %v490 = vmul.f32 %v313, %v461
        %v491 = vmul.f32 %v314, %v461
        %v492 = vmul.f32 %v316, %v461
        %v493 = vmul.f32 %v317, %v461
        %v494 = vadd.f32 %v426, %v462
        %v495 = vadd.f32 %v427, %v463
        %v496 = vadd.f32 %v428, %v464
        %v497 = vadd.f32 %v429, %v465
        %v498 = vadd.f32 %v430, %v466
        %v499 = vadd.f32 %v431, %v467
        %v500 = vadd.f32 %v432, %v468
        %v501 = vadd.f32 %v433, %v469
        %v502 = vadd.f32 %v434, %v470
        %v503 = vadd.f32 %v435, %v471
        %v504 = vadd.f32 %v436, %v472
        %v505 = vadd.f32 %v437, %v473
        %v506 = vadd.f32 %v438, %v474
        %v507 = vadd.f32 %v439, %v475
        %v508 = vadd.f32 %v440, %v476
        %v509 = vadd.f32 %v441, %v477
        %v510 = vadd.f32 %v442, %v478
        %v511 = vadd.f32 %v443, %v479
        %v512 = vadd.f32 %v444, %v480
        %v513 = vadd.f32 %v445, %v481
        %v514 = vadd.f32 %v446, %v482
        %v515 = vadd.f32 %v447, %v483
        %v516 = vadd.f32 %v448, %v484
        %v517 = vadd.f32 %v449, %v485
        %v518 = vadd.f32 %v450, %v486
        %v519 = vadd.f32 %v451, %v487
        %v520 = vadd.f32 %v452, %v488
        %v521 = vadd.f32 %v453, %v489
        %v522 = vadd.f32 %v454, %v490
        %v523 = vadd.f32 %v455, %v491
        %v524 = vadd.f32 %v456, %v492
        %v525 = vadd.f32 %v457, %v493
        %v526 = vlaneseq
        %v527 = vshrl.u32 %v526, 7
        %v528 = vsub.s32 1, %v527
        %v529 = vrot.slane %v319, %v528
        %v530 = vmul.f32 %v265, %v529
        %v531 = vmul.f32 %v266, %v529
        %v532 = vmul.f32 %v267, %v529
        %v533 = vmul.f32 %v268, %v529
        %v534 = vmul.f32 %v269, %v529
        %v535 = vmul.f32 %v270, %v529
        %v536 = vmul.f32 %v271, %v529
        %v537 = vmul.f32 %v272, %v529
        %v538 = vmul.f32 %v273, %v529
        %v539 = vmul.f32 %v274, %v529
        %v540 = vmul.f32 %v275, %v529
        %v541 = vmul.f32 %v276, %v529
        %v542 = vmul.f32 %v277, %v529
        %v543 = vmul.f32 %v278, %v529
        %v544 = vmul.f32 %v279, %v529
        %v545 = vmul.f32 %v280, %v529
        %v546 = vmul.f32 %v281, %v529
        %v547 = vmul.f32 %v282, %v529
        %v548 = vmul.f32 %v283, %v529
        %v549 = vmul.f32 %v284, %v529
        %v550 = vmul.f32 %v285, %v529
        %v551 = vmul.f32 %v286, %v529
        %v552 = vmul.f32 %v287, %v529
        %v553 = vmul.f32 %v288, %v529
        %v554 = vmul.f32 %v289, %v529
        %v555 = vmul.f32 %v290, %v529
        %v556 = vmul.f32 %v291, %v529
        %v557 = vmul.f32 %v292, %v529
        %v558 = vmul.f32 %v293, %v529
        %v559 = vmul.f32 %v294, %v529
        %v560 = vmul.f32 %v295, %v529
        %v561 = vmul.f32 %v296, %v529
        %v562 = vmul.f32 %v297, %v529
        %v563 = vmul.f32 %v298, %v529
        %v564 = vmul.f32 %v299, %v529
        %v565 = vmul.f32 %v300, %v529
        %v566 = vmul.f32 %v301, %v529
        %v567 = vmul.f32 %v302, %v529
        %v568 = vmul.f32 %v303, %v529
        %v569 = vmul.f32 %v304, %v529
        %v570 = vmul.f32 %v305, %v529
        %v571 = vmul.f32 %v306, %v529
        %v572 = vmul.f32 %v307, %v529
        %v573 = vmul.f32 %v308, %v529
        %v574 = vmul.f32 %v309, %v529
        %v575 = vmul.f32 %v310, %v529
        %v576 = vmul.f32 %v311, %v529
        %v577 = vmul.f32 %v312, %v529
        %vm626 = vcmask 1046528
        %v627 = vrot.slane %v530, 1
        %v628 = vrot.slane %v531, 1
        %v629 = vsel %vm626, %v627, %v628
        %v630 = vrot.slane %v532, 1
        %v631 = vsel %vm626, %v628, %v630
        %v632 = vrot.slane %v533, 1
        %v633 = vrot.slane %v534, 1
        %v634 = vsel %vm626, %v632, %v633
        %v635 = vrot.slane %v535, 1
        %v636 = vsel %vm626, %v633, %v635
        %v637 = vrot.slane %v536, 1
        %v638 = vrot.slane %v537, 1
        %v639 = vsel %vm626, %v637, %v638
        %v640 = vrot.slane %v538, 1
        %v641 = vsel %vm626, %v638, %v640
        %v642 = vrot.slane %v539, 1
        %v643 = vrot.slane %v540, 1
        %v644 = vsel %vm626, %v642, %v643
        %v645 = vrot.slane %v541, 1
        %v646 = vsel %vm626, %v643, %v645
        %v647 = vrot.slane %v542, 1
        %v648 = vrot.slane %v543, 1
        %v649 = vsel %vm626, %v647, %v648
        %v650 = vrot.slane %v544, 1
        %v651 = vsel %vm626, %v648, %v650
        %v652 = vrot.slane %v545, 1
        %v653 = vrot.slane %v546, 1
        %v654 = vsel %vm626, %v652, %v653
        %v655 = vrot.slane %v547, 1
        %v656 = vsel %vm626, %v653, %v655
        %v657 = vrot.slane %v548, 1
        %v658 = vrot.slane %v549, 1
        %v659 = vsel %vm626, %v657, %v658
        %v660 = vrot.slane %v550, 1
        %v661 = vsel %vm626, %v658, %v660
        %v662 = vrot.slane %v551, 1
        %v663 = vrot.slane %v552, 1
        %v664 = vsel %vm626, %v662, %v663
        %v665 = vrot.slane %v553, 1
        %v666 = vsel %vm626, %v663, %v665
        %v667 = vrot.slane %v554, 1
        %v668 = vrot.slane %v555, 1
        %v669 = vsel %vm626, %v667, %v668
        %v670 = vrot.slane %v556, 1
        %v671 = vsel %vm626, %v668, %v670
        %v672 = vrot.slane %v557, 1
        %v673 = vrot.slane %v558, 1
        %v674 = vsel %vm626, %v672, %v673
        %v675 = vrot.slane %v559, 1
        %v676 = vsel %vm626, %v673, %v675
        %v677 = vrot.slane %v560, 1
        %v678 = vrot.slane %v561, 1
        %v679 = vsel %vm626, %v677, %v678
        %v680 = vrot.slane %v562, 1
        %v681 = vsel %vm626, %v678, %v680
        %v682 = vrot.slane %v563, 1
        %v683 = vrot.slane %v564, 1
        %v684 = vsel %vm626, %v682, %v683
        %v685 = vrot.slane %v565, 1
        %v686 = vsel %vm626, %v683, %v685
        %v687 = vrot.slane %v566, 1
        %v688 = vrot.slane %v567, 1
        %v689 = vsel %vm626, %v687, %v688
        %v690 = vrot.slane %v568, 1
        %v691 = vsel %vm626, %v688, %v690
        %v692 = vrot.slane %v569, 1
        %v693 = vrot.slane %v570, 1
        %v694 = vsel %vm626, %v692, %v693
        %v695 = vrot.slane %v571, 1
        %v696 = vsel %vm626, %v693, %v695
        %v697 = vrot.slane %v572, 1
        %v698 = vrot.slane %v573, 1
        %v699 = vsel %vm626, %v697, %v698
        %v700 = vrot.slane %v574, 1
        %v701 = vsel %vm626, %v698, %v700
        %v702 = vrot.slane %v575, 1
        %v703 = vrot.slane %v576, 1
        %v704 = vsel %vm626, %v702, %v703
        %v705 = vrot.slane %v577, 1
        %v706 = vsel %vm626, %v703, %v705
        %v739 = vadd.f32 %v494, %v629
        %v740 = vadd.f32 %v495, %v631
        %v741 = vadd.f32 %v496, %v634
        %v742 = vadd.f32 %v497, %v636
        %v743 = vadd.f32 %v498, %v639
        %v744 = vadd.f32 %v499, %v641
        %v745 = vadd.f32 %v500, %v644
        %v746 = vadd.f32 %v501, %v646
        %v747 = vadd.f32 %v502, %v649
        %v748 = vadd.f32 %v503, %v651
        %v749 = vadd.f32 %v504, %v654
        %v750 = vadd.f32 %v505, %v656
        %v751 = vadd.f32 %v506, %v659
        %v752 = vadd.f32 %v507, %v661
        %v753 = vadd.f32 %v508, %v664
        %v754 = vadd.f32 %v509, %v666
        %v755 = vadd.f32 %v510, %v669
        %v756 = vadd.f32 %v511, %v671
        %v757 = vadd.f32 %v512, %v674
        %v758 = vadd.f32 %v513, %v676
        %v759 = vadd.f32 %v514, %v679
        %v760 = vadd.f32 %v515, %v681
        %v761 = vadd.f32 %v516, %v684
        %v762 = vadd.f32 %v517, %v686
        %v763 = vadd.f32 %v518, %v689
        %v764 = vadd.f32 %v519, %v691
        %v765 = vadd.f32 %v520, %v694
        %v766 = vadd.f32 %v521, %v696
        %v767 = vadd.f32 %v522, %v699
        %v768 = vadd.f32 %v523, %v701
        %v769 = vadd.f32 %v524, %v704
        %v770 = vadd.f32 %v525, %v706
        %v771 = vlaneseq
        %v772 = vshrl.u32 %v771, 7
        %v773 = vsub.s32 1, %v772
        %v774 = vrot.slane %v320, %v773
        %v775 = vmul.f32 %v268, %v774
        %v776 = vmul.f32 %v269, %v774
        %v777 = vmul.f32 %v270, %v774
        %v778 = vmul.f32 %v271, %v774
        %v779 = vmul.f32 %v272, %v774
        %v780 = vmul.f32 %v273, %v774
        %v781 = vmul.f32 %v274, %v774
        %v782 = vmul.f32 %v275, %v774
        %v783 = vmul.f32 %v276, %v774
        %v784 = vmul.f32 %v277, %v774
        %v785 = vmul.f32 %v278, %v774
        %v786 = vmul.f32 %v279, %v774
        %v787 = vmul.f32 %v280, %v774
        %v788 = vmul.f32 %v281, %v774
        %v789 = vmul.f32 %v282, %v774
        %v790 = vmul.f32 %v283, %v774
        %v791 = vmul.f32 %v284, %v774
        %v792 = vmul.f32 %v285, %v774
        %v793 = vmul.f32 %v286, %v774
        %v794 = vmul.f32 %v287, %v774
        %v795 = vmul.f32 %v288, %v774
        %v796 = vmul.f32 %v289, %v774
        %v797 = vmul.f32 %v290, %v774
        %v798 = vmul.f32 %v291, %v774
        %v799 = vmul.f32 %v292, %v774
        %v800 = vmul.f32 %v293, %v774
        %v801 = vmul.f32 %v294, %v774
        %v802 = vmul.f32 %v295, %v774
        %v803 = vmul.f32 %v296, %v774
        %v804 = vmul.f32 %v297, %v774
        %v805 = vmul.f32 %v298, %v774
        %v806 = vmul.f32 %v299, %v774
        %v807 = vmul.f32 %v300, %v774
        %v808 = vmul.f32 %v301, %v774
        %v809 = vmul.f32 %v302, %v774
        %v810 = vmul.f32 %v303, %v774
        %v811 = vmul.f32 %v304, %v774
        %v812 = vmul.f32 %v305, %v774
        %v813 = vmul.f32 %v306, %v774
        %v814 = vmul.f32 %v307, %v774
        %v815 = vmul.f32 %v308, %v774
        %v816 = vmul.f32 %v309, %v774
        %v817 = vmul.f32 %v310, %v774
        %v818 = vmul.f32 %v311, %v774
        %v819 = vmul.f32 %v312, %v774
        %v820 = vmul.f32 %v313, %v774
        %v821 = vmul.f32 %v314, %v774
        %v822 = vmul.f32 %v315, %v774
        %v871 = vrot.slane %v775, 1
        %v872 = vrot.slane %v776, 1
        %v873 = vsel %vm626, %v871, %v872
        %v874 = vrot.slane %v777, 1
        %v875 = vsel %vm626, %v872, %v874
        %v876 = vrot.slane %v778, 1
        %v877 = vrot.slane %v779, 1
        %v878 = vsel %vm626, %v876, %v877
        %v879 = vrot.slane %v780, 1
        %v880 = vsel %vm626, %v877, %v879
        %v881 = vrot.slane %v781, 1
        %v882 = vrot.slane %v782, 1
        %v883 = vsel %vm626, %v881, %v882
        %v884 = vrot.slane %v783, 1
        %v885 = vsel %vm626, %v882, %v884
        %v886 = vrot.slane %v784, 1
        %v887 = vrot.slane %v785, 1
        %v888 = vsel %vm626, %v886, %v887
        %v889 = vrot.slane %v786, 1
        %v890 = vsel %vm626, %v887, %v889
        %v891 = vrot.slane %v787, 1
        %v892 = vrot.slane %v788, 1
        %v893 = vsel %vm626, %v891, %v892
        %v894 = vrot.slane %v789, 1
        %v895 = vsel %vm626, %v892, %v894
        %v896 = vrot.slane %v790, 1
        %v897 = vrot.slane %v791, 1
        %v898 = vsel %vm626, %v896, %v897
        %v899 = vrot.slane %v792, 1
        %v900 = vsel %vm626, %v897, %v899
        %v901 = vrot.slane %v793, 1
        %v902 = vrot.slane %v794, 1
        %v903 = vsel %vm626, %v901, %v902
        %v904 = vrot.slane %v795, 1
        %v905 = vsel %vm626, %v902, %v904
        %v906 = vrot.slane %v796, 1
        %v907 = vrot.slane %v797, 1
        %v908 = vsel %vm626, %v906, %v907
        %v909 = vrot.slane %v798, 1
        %v910 = vsel %vm626, %v907, %v909
        %v911 = vrot.slane %v799, 1
        %v912 = vrot.slane %v800, 1
        %v913 = vsel %vm626, %v911, %v912
        %v914 = vrot.slane %v801, 1
        %v915 = vsel %vm626, %v912, %v914
        %v916 = vrot.slane %v802, 1
        %v917 = vrot.slane %v803, 1
        %v918 = vsel %vm626, %v916, %v917
        %v919 = vrot.slane %v804, 1
        %v920 = vsel %vm626, %v917, %v919
        %v921 = vrot.slane %v805, 1
        %v922 = vrot.slane %v806, 1
        %v923 = vsel %vm626, %v921, %v922
        %v924 = vrot.slane %v807, 1
        %v925 = vsel %vm626, %v922, %v924
        %v926 = vrot.slane %v808, 1
        %v927 = vrot.slane %v809, 1
        %v928 = vsel %vm626, %v926, %v927
        %v929 = vrot.slane %v810, 1
        %v930 = vsel %vm626, %v927, %v929
        %v931 = vrot.slane %v811, 1
        %v932 = vrot.slane %v812, 1
        %v933 = vsel %vm626, %v931, %v932
        %v934 = vrot.slane %v813, 1
        %v935 = vsel %vm626, %v932, %v934
        %v936 = vrot.slane %v814, 1
        %v937 = vrot.slane %v815, 1
        %v938 = vsel %vm626, %v936, %v937
        %v939 = vrot.slane %v816, 1
        %v940 = vsel %vm626, %v937, %v939
        %v941 = vrot.slane %v817, 1
        %v942 = vrot.slane %v818, 1
        %v943 = vsel %vm626, %v941, %v942
        %v944 = vrot.slane %v819, 1
        %v945 = vsel %vm626, %v942, %v944
        %v946 = vrot.slane %v820, 1
        %v947 = vrot.slane %v821, 1
        %v948 = vsel %vm626, %v946, %v947
        %v949 = vrot.slane %v822, 1
        %v950 = vsel %vm626, %v947, %v949
        %v983 = vadd.f32 %v739, %v873
        %v984 = vadd.f32 %v740, %v875
        %v985 = vadd.f32 %v741, %v878
        %v986 = vadd.f32 %v742, %v880
        %v987 = vadd.f32 %v743, %v883
        %v988 = vadd.f32 %v744, %v885
        %v989 = vadd.f32 %v745, %v888
        %v990 = vadd.f32 %v746, %v890
        %v991 = vadd.f32 %v747, %v893
        %v992 = vadd.f32 %v748, %v895
        %v993 = vadd.f32 %v749, %v898
        %v994 = vadd.f32 %v750, %v900
        %v995 = vadd.f32 %v751, %v903
        %v996 = vadd.f32 %v752, %v905
        %v997 = vadd.f32 %v753, %v908
        %v998 = vadd.f32 %v754, %v910
        %v999 = vadd.f32 %v755, %v913
        %v1000 = vadd.f32 %v756, %v915
        %v1001 = vadd.f32 %v757, %v918
        %v1002 = vadd.f32 %v758, %v920
        %v1003 = vadd.f32 %v759, %v923
        %v1004 = vadd.f32 %v760, %v925
        %v1005 = vadd.f32 %v761, %v928
        %v1006 = vadd.f32 %v762, %v930
        %v1007 = vadd.f32 %v763, %v933
        %v1008 = vadd.f32 %v764, %v935
        %v1009 = vadd.f32 %v765, %v938
        %v1010 = vadd.f32 %v766, %v940
        %v1011 = vadd.f32 %v767, %v943
        %v1012 = vadd.f32 %v768, %v945
        %v1013 = vadd.f32 %v769, %v948
        %v1014 = vadd.f32 %v770, %v950
        %v1015 = vlaneseq
        %v1016 = vshrl.u32 %v1015, 7
        %v1017 = vsub.s32 1, %v1016
        %v1018 = vrot.slane %v321, %v1017
        %v1019 = vmul.f32 %v271, %v1018
        %v1020 = vmul.f32 %v272, %v1018
        %v1021 = vmul.f32 %v273, %v1018
        %v1022 = vmul.f32 %v274, %v1018
        %v1023 = vmul.f32 %v275, %v1018
        %v1024 = vmul.f32 %v276, %v1018
        %v1025 = vmul.f32 %v277, %v1018
        %v1026 = vmul.f32 %v278, %v1018
        %v1027 = vmul.f32 %v279, %v1018
        %v1028 = vmul.f32 %v280, %v1018
        %v1029 = vmul.f32 %v281, %v1018
        %v1030 = vmul.f32 %v282, %v1018
        %v1031 = vmul.f32 %v283, %v1018
        %v1032 = vmul.f32 %v284, %v1018
        %v1033 = vmul.f32 %v285, %v1018
        %v1034 = vmul.f32 %v286, %v1018
        %v1035 = vmul.f32 %v287, %v1018
        %v1036 = vmul.f32 %v288, %v1018
        %v1037 = vmul.f32 %v289, %v1018
        %v1038 = vmul.f32 %v290, %v1018
        %v1039 = vmul.f32 %v291, %v1018
        %v1040 = vmul.f32 %v292, %v1018
        %v1041 = vmul.f32 %v293, %v1018
        %v1042 = vmul.f32 %v294, %v1018
        %v1043 = vmul.f32 %v295, %v1018
        %v1044 = vmul.f32 %v296, %v1018
        %v1045 = vmul.f32 %v297, %v1018
        %v1046 = vmul.f32 %v298, %v1018
        %v1047 = vmul.f32 %v299, %v1018
        %v1048 = vmul.f32 %v300, %v1018
        %v1049 = vmul.f32 %v301, %v1018
        %v1050 = vmul.f32 %v302, %v1018
        %v1051 = vmul.f32 %v303, %v1018
        %v1052 = vmul.f32 %v304, %v1018
        %v1053 = vmul.f32 %v305, %v1018
        %v1054 = vmul.f32 %v306, %v1018
        %v1055 = vmul.f32 %v307, %v1018
        %v1056 = vmul.f32 %v308, %v1018
        %v1057 = vmul.f32 %v309, %v1018
        %v1058 = vmul.f32 %v310, %v1018
        %v1059 = vmul.f32 %v311, %v1018
        %v1060 = vmul.f32 %v312, %v1018
        %v1061 = vmul.f32 %v313, %v1018
        %v1062 = vmul.f32 %v314, %v1018
        %v1063 = vmul.f32 %v315, %v1018
        %v1064 = vmul.f32 %v316, %v1018
        %v1065 = vmul.f32 %v317, %v1018
        %v1066 = vmul.f32 %v318, %v1018
        %v1115 = vrot.slane %v1019, 1
        %v1116 = vrot.slane %v1020, 1
        %v1117 = vsel %vm626, %v1115, %v1116
        %v1118 = vrot.slane %v1021, 1
        %v1119 = vsel %vm626, %v1116, %v1118
        %v1120 = vrot.slane %v1022, 1
        %v1121 = vrot.slane %v1023, 1
        %v1122 = vsel %vm626, %v1120, %v1121
        %v1123 = vrot.slane %v1024, 1
        %v1124 = vsel %vm626, %v1121, %v1123
        %v1125 = vrot.slane %v1025, 1
        %v1126 = vrot.slane %v1026, 1
        %v1127 = vsel %vm626, %v1125, %v1126
        %v1128 = vrot.slane %v1027, 1
        %v1129 = vsel %vm626, %v1126, %v1128
        %v1130 = vrot.slane %v1028, 1
        %v1131 = vrot.slane %v1029, 1
        %v1132 = vsel %vm626, %v1130, %v1131
        %v1133 = vrot.slane %v1030, 1
        %v1134 = vsel %vm626, %v1131, %v1133
        %v1135 = vrot.slane %v1031, 1
        %v1136 = vrot.slane %v1032, 1
        %v1137 = vsel %vm626, %v1135, %v1136
        %v1138 = vrot.slane %v1033, 1
        %v1139 = vsel %vm626, %v1136, %v1138
        %v1140 = vrot.slane %v1034, 1
        %v1141 = vrot.slane %v1035, 1
        %v1142 = vsel %vm626, %v1140, %v1141
        %v1143 = vrot.slane %v1036, 1
        %v1144 = vsel %vm626, %v1141, %v1143
        %v1145 = vrot.slane %v1037, 1
        %v1146 = vrot.slane %v1038, 1
        %v1147 = vsel %vm626, %v1145, %v1146
        %v1148 = vrot.slane %v1039, 1
        %v1149 = vsel %vm626, %v1146, %v1148
        %v1150 = vrot.slane %v1040, 1
        %v1151 = vrot.slane %v1041, 1
        %v1152 = vsel %vm626, %v1150, %v1151
        %v1153 = vrot.slane %v1042, 1
        %v1154 = vsel %vm626, %v1151, %v1153
        %v1155 = vrot.slane %v1043, 1
        %v1156 = vrot.slane %v1044, 1
        %v1157 = vsel %vm626, %v1155, %v1156
        %v1158 = vrot.slane %v1045, 1
        %v1159 = vsel %vm626, %v1156, %v1158
        %v1160 = vrot.slane %v1046, 1
        %v1161 = vrot.slane %v1047, 1
        %v1162 = vsel %vm626, %v1160, %v1161
        %v1163 = vrot.slane %v1048, 1
        %v1164 = vsel %vm626, %v1161, %v1163
        %v1165 = vrot.slane %v1049, 1
        %v1166 = vrot.slane %v1050, 1
        %v1167 = vsel %vm626, %v1165, %v1166
        %v1168 = vrot.slane %v1051, 1
        %v1169 = vsel %vm626, %v1166, %v1168
        %v1170 = vrot.slane %v1052, 1
        %v1171 = vrot.slane %v1053, 1
        %v1172 = vsel %vm626, %v1170, %v1171
        %v1173 = vrot.slane %v1054, 1
        %v1174 = vsel %vm626, %v1171, %v1173
        %v1175 = vrot.slane %v1055, 1
        %v1176 = vrot.slane %v1056, 1
        %v1177 = vsel %vm626, %v1175, %v1176
        %v1178 = vrot.slane %v1057, 1
        %v1179 = vsel %vm626, %v1176, %v1178
        %v1180 = vrot.slane %v1058, 1
        %v1181 = vrot.slane %v1059, 1
        %v1182 = vsel %vm626, %v1180, %v1181
        %v1183 = vrot.slane %v1060, 1
        %v1184 = vsel %vm626, %v1181, %v1183
        %v1185 = vrot.slane %v1061, 1
        %v1186 = vrot.slane %v1062, 1
        %v1187 = vsel %vm626, %v1185, %v1186
        %v1188 = vrot.slane %v1063, 1
        %v1189 = vsel %vm626, %v1186, %v1188
        %v1190 = vrot.slane %v1064, 1
        %v1191 = vrot.slane %v1065, 1
        %v1192 = vsel %vm626, %v1190, %v1191
        %v1193 = vrot.slane %v1066, 1
        %v1194 = vsel %vm626, %v1191, %v1193
        %v1227 = vadd.f32 %v983, %v1117
        %v1228 = vadd.f32 %v984, %v1119
        %v1229 = vadd.f32 %v985, %v1122
        %v1230 = vadd.f32 %v986, %v1124
        %v1231 = vadd.f32 %v987, %v1127
        %v1232 = vadd.f32 %v988, %v1129
        %v1233 = vadd.f32 %v989, %v1132
        %v1234 = vadd.f32 %v990, %v1134
        %v1235 = vadd.f32 %v991, %v1137
        %v1236 = vadd.f32 %v992, %v1139
        %v1237 = vadd.f32 %v993, %v1142
        %v1238 = vadd.f32 %v994, %v1144
        %v1239 = vadd.f32 %v995, %v1147
        %v1240 = vadd.f32 %v996, %v1149
        %v1241 = vadd.f32 %v997, %v1152
        %v1242 = vadd.f32 %v998, %v1154
        %v1243 = vadd.f32 %v999, %v1157
        %v1244 = vadd.f32 %v1000, %v1159
        %v1245 = vadd.f32 %v1001, %v1162
        %v1246 = vadd.f32 %v1002, %v1164
        %v1247 = vadd.f32 %v1003, %v1167
        %v1248 = vadd.f32 %v1004, %v1169
        %v1249 = vadd.f32 %v1005, %v1172
        %v1250 = vadd.f32 %v1006, %v1174
        %v1251 = vadd.f32 %v1007, %v1177
        %v1252 = vadd.f32 %v1008, %v1179
        %v1253 = vadd.f32 %v1009, %v1182
        %v1254 = vadd.f32 %v1010, %v1184
        %v1255 = vadd.f32 %v1011, %v1187
        %v1256 = vadd.f32 %v1012, %v1189
        %v1257 = vadd.f32 %v1013, %v1192
        %v1258 = vadd.f32 %v1014, %v1194
        %v1259 = vlaneseq
        %v1260 = vshrl.u32 %v1259, 7
        %v1261 = vsub.s32 2, %v1260
        %v1262 = vrot.slane %v319, %v1261
        %v1263 = vmul.f32 %v265, %v1262
        %v1264 = vmul.f32 %v266, %v1262
        %v1265 = vmul.f32 %v267, %v1262
        %v1266 = vmul.f32 %v268, %v1262
        %v1267 = vmul.f32 %v269, %v1262
        %v1268 = vmul.f32 %v270, %v1262
        %v1269 = vmul.f32 %v271, %v1262
        %v1270 = vmul.f32 %v272, %v1262
        %v1271 = vmul.f32 %v273, %v1262
        %v1272 = vmul.f32 %v274, %v1262
        %v1273 = vmul.f32 %v275, %v1262
        %v1274 = vmul.f32 %v276, %v1262
        %v1275 = vmul.f32 %v277, %v1262
        %v1276 = vmul.f32 %v278, %v1262
        %v1277 = vmul.f32 %v279, %v1262
        %v1278 = vmul.f32 %v280, %v1262
        %v1279 = vmul.f32 %v281, %v1262
        %v1280 = vmul.f32 %v282, %v1262
        %v1281 = vmul.f32 %v283, %v1262
        %v1282 = vmul.f32 %v284, %v1262
        %v1283 = vmul.f32 %v285, %v1262
        %v1284 = vmul.f32 %v286, %v1262
        %v1285 = vmul.f32 %v287, %v1262
        %v1286 = vmul.f32 %v288, %v1262
        %v1287 = vmul.f32 %v289, %v1262
        %v1288 = vmul.f32 %v290, %v1262
        %v1289 = vmul.f32 %v291, %v1262
        %v1290 = vmul.f32 %v292, %v1262
        %v1291 = vmul.f32 %v293, %v1262
        %v1292 = vmul.f32 %v294, %v1262
        %v1293 = vmul.f32 %v295, %v1262
        %v1294 = vmul.f32 %v296, %v1262
        %v1295 = vmul.f32 %v297, %v1262
        %v1296 = vmul.f32 %v298, %v1262
        %v1297 = vmul.f32 %v299, %v1262
        %v1298 = vmul.f32 %v300, %v1262
        %v1299 = vmul.f32 %v301, %v1262
        %v1300 = vmul.f32 %v302, %v1262
        %v1301 = vmul.f32 %v303, %v1262
        %v1302 = vmul.f32 %v304, %v1262
        %v1303 = vmul.f32 %v305, %v1262
        %v1304 = vmul.f32 %v306, %v1262
        %v1305 = vmul.f32 %v307, %v1262
        %v1306 = vmul.f32 %v308, %v1262
        %v1307 = vmul.f32 %v309, %v1262
        %v1308 = vmul.f32 %v310, %v1262
        %v1309 = vmul.f32 %v311, %v1262
        %v1310 = vmul.f32 %v312, %v1262
        %vm1359 = vcmask 1045504
        %v1360 = vrot.slane %v1263, 2
        %v1361 = vrot.slane %v1264, 2
        %v1362 = vsel %vm1359, %v1360, %v1361
        %v1363 = vrot.slane %v1265, 2
        %v1364 = vsel %vm1359, %v1361, %v1363
        %v1365 = vrot.slane %v1266, 2
        %v1366 = vrot.slane %v1267, 2
        %v1367 = vsel %vm1359, %v1365, %v1366
        %v1368 = vrot.slane %v1268, 2
        %v1369 = vsel %vm1359, %v1366, %v1368
        %v1370 = vrot.slane %v1269, 2
        %v1371 = vrot.slane %v1270, 2
        %v1372 = vsel %vm1359, %v1370, %v1371
        %v1373 = vrot.slane %v1271, 2
        %v1374 = vsel %vm1359, %v1371, %v1373
        %v1375 = vrot.slane %v1272, 2
        %v1376 = vrot.slane %v1273, 2
        %v1377 = vsel %vm1359, %v1375, %v1376
        %v1378 = vrot.slane %v1274, 2
        %v1379 = vsel %vm1359, %v1376, %v1378
        %v1380 = vrot.slane %v1275, 2
        %v1381 = vrot.slane %v1276, 2
        %v1382 = vsel %vm1359, %v1380, %v1381
        %v1383 = vrot.slane %v1277, 2
        %v1384 = vsel %vm1359, %v1381, %v1383
        %v1385 = vrot.slane %v1278, 2
        %v1386 = vrot.slane %v1279, 2
        %v1387 = vsel %vm1359, %v1385, %v1386
        %v1388 = vrot.slane %v1280, 2
        %v1389 = vsel %vm1359, %v1386, %v1388
        %v1390 = vrot.slane %v1281, 2
        %v1391 = vrot.slane %v1282, 2
        %v1392 = vsel %vm1359, %v1390, %v1391
        %v1393 = vrot.slane %v1283, 2
        %v1394 = vsel %vm1359, %v1391, %v1393
        %v1395 = vrot.slane %v1284, 2
        %v1396 = vrot.slane %v1285, 2
        %v1397 = vsel %vm1359, %v1395, %v1396
        %v1398 = vrot.slane %v1286, 2
        %v1399 = vsel %vm1359, %v1396, %v1398
        %v1400 = vrot.slane %v1287, 2
        %v1401 = vrot.slane %v1288, 2
        %v1402 = vsel %vm1359, %v1400, %v1401
        %v1403 = vrot.slane %v1289, 2
        %v1404 = vsel %vm1359, %v1401, %v1403
        %v1405 = vrot.slane %v1290, 2
        %v1406 = vrot.slane %v1291, 2
        %v1407 = vsel %vm1359, %v1405, %v1406
        %v1408 = vrot.slane %v1292, 2
        %v1409 = vsel %vm1359, %v1406, %v1408
        %v1410 = vrot.slane %v1293, 2
        %v1411 = vrot.slane %v1294, 2
        %v1412 = vsel %vm1359, %v1410, %v1411
        %v1413 = vrot.slane %v1295, 2
        %v1414 = vsel %vm1359, %v1411, %v1413
        %v1415 = vrot.slane %v1296, 2
        %v1416 = vrot.slane %v1297, 2
        %v1417 = vsel %vm1359, %v1415, %v1416
        %v1418 = vrot.slane %v1298, 2
        %v1419 = vsel %vm1359, %v1416, %v1418
        %v1420 = vrot.slane %v1299, 2
        %v1421 = vrot.slane %v1300, 2
        %v1422 = vsel %vm1359, %v1420, %v1421
        %v1423 = vrot.slane %v1301, 2
        %v1424 = vsel %vm1359, %v1421, %v1423
        %v1425 = vrot.slane %v1302, 2
        %v1426 = vrot.slane %v1303, 2
        %v1427 = vsel %vm1359, %v1425, %v1426
        %v1428 = vrot.slane %v1304, 2
        %v1429 = vsel %vm1359, %v1426, %v1428
        %v1430 = vrot.slane %v1305, 2
        %v1431 = vrot.slane %v1306, 2
        %v1432 = vsel %vm1359, %v1430, %v1431
        %v1433 = vrot.slane %v1307, 2
        %v1434 = vsel %vm1359, %v1431, %v1433
        %v1435 = vrot.slane %v1308, 2
        %v1436 = vrot.slane %v1309, 2
        %v1437 = vsel %vm1359, %v1435, %v1436
        %v1438 = vrot.slane %v1310, 2
        %v1439 = vsel %vm1359, %v1436, %v1438
        %v1472 = vadd.f32 %v1227, %v1362
        %v1473 = vadd.f32 %v1228, %v1364
        %v1474 = vadd.f32 %v1229, %v1367
        %v1475 = vadd.f32 %v1230, %v1369
        %v1476 = vadd.f32 %v1231, %v1372
        %v1477 = vadd.f32 %v1232, %v1374
        %v1478 = vadd.f32 %v1233, %v1377
        %v1479 = vadd.f32 %v1234, %v1379
        %v1480 = vadd.f32 %v1235, %v1382
        %v1481 = vadd.f32 %v1236, %v1384
        %v1482 = vadd.f32 %v1237, %v1387
        %v1483 = vadd.f32 %v1238, %v1389
        %v1484 = vadd.f32 %v1239, %v1392
        %v1485 = vadd.f32 %v1240, %v1394
        %v1486 = vadd.f32 %v1241, %v1397
        %v1487 = vadd.f32 %v1242, %v1399
        %v1488 = vadd.f32 %v1243, %v1402
        %v1489 = vadd.f32 %v1244, %v1404
        %v1490 = vadd.f32 %v1245, %v1407
        %v1491 = vadd.f32 %v1246, %v1409
        %v1492 = vadd.f32 %v1247, %v1412
        %v1493 = vadd.f32 %v1248, %v1414
        %v1494 = vadd.f32 %v1249, %v1417
        %v1495 = vadd.f32 %v1250, %v1419
        %v1496 = vadd.f32 %v1251, %v1422
        %v1497 = vadd.f32 %v1252, %v1424
        %v1498 = vadd.f32 %v1253, %v1427
        %v1499 = vadd.f32 %v1254, %v1429
        %v1500 = vadd.f32 %v1255, %v1432
        %v1501 = vadd.f32 %v1256, %v1434
        %v1502 = vadd.f32 %v1257, %v1437
        %v1503 = vadd.f32 %v1258, %v1439
        %v1504 = vlaneseq
        %v1505 = vshrl.u32 %v1504, 7
        %v1506 = vsub.s32 2, %v1505
        %v1507 = vrot.slane %v320, %v1506
        %v1508 = vmul.f32 %v268, %v1507
        %v1509 = vmul.f32 %v269, %v1507
        %v1510 = vmul.f32 %v270, %v1507
        %v1511 = vmul.f32 %v271, %v1507
        %v1512 = vmul.f32 %v272, %v1507
        %v1513 = vmul.f32 %v273, %v1507
        %v1514 = vmul.f32 %v274, %v1507
        %v1515 = vmul.f32 %v275, %v1507
        %v1516 = vmul.f32 %v276, %v1507
        %v1517 = vmul.f32 %v277, %v1507
        %v1518 = vmul.f32 %v278, %v1507
        %v1519 = vmul.f32 %v279, %v1507
        %v1520 = vmul.f32 %v280, %v1507
        %v1521 = vmul.f32 %v281, %v1507
        %v1522 = vmul.f32 %v282, %v1507
        %v1523 = vmul.f32 %v283, %v1507
        %v1524 = vmul.f32 %v284, %v1507
        %v1525 = vmul.f32 %v285, %v1507
        %v1526 = vmul.f32 %v286, %v1507
        %v1527 = vmul.f32 %v287, %v1507
        %v1528 = vmul.f32 %v288, %v1507
        %v1529 = vmul.f32 %v289, %v1507
        %v1530 = vmul.f32 %v290, %v1507
        %v1531 = vmul.f32 %v291, %v1507
        %v1532 = vmul.f32 %v292, %v1507
        %v1533 = vmul.f32 %v293, %v1507
        %v1534 = vmul.f32 %v294, %v1507
        %v1535 = vmul.f32 %v295, %v1507
        %v1536 = vmul.f32 %v296, %v1507
        %v1537 = vmul.f32 %v297, %v1507
        %v1538 = vmul.f32 %v298, %v1507
        %v1539 = vmul.f32 %v299, %v1507
        %v1540 = vmul.f32 %v300, %v1507
        %v1541 = vmul.f32 %v301, %v1507
        %v1542 = vmul.f32 %v302, %v1507
        %v1543 = vmul.f32 %v303, %v1507
        %v1544 = vmul.f32 %v304, %v1507
        %v1545 = vmul.f32 %v305, %v1507
        %v1546 = vmul.f32 %v306, %v1507
        %v1547 = vmul.f32 %v307, %v1507
        %v1548 = vmul.f32 %v308, %v1507
        %v1549 = vmul.f32 %v309, %v1507
        %v1550 = vmul.f32 %v310, %v1507
        %v1551 = vmul.f32 %v311, %v1507
        %v1552 = vmul.f32 %v312, %v1507
        %v1553 = vmul.f32 %v313, %v1507
        %v1554 = vmul.f32 %v314, %v1507
        %v1555 = vmul.f32 %v315, %v1507
        %v1604 = vrot.slane %v1508, 2
        %v1605 = vrot.slane %v1509, 2
        %v1606 = vsel %vm1359, %v1604, %v1605
        %v1607 = vrot.slane %v1510, 2
        %v1608 = vsel %vm1359, %v1605, %v1607
        %v1609 = vrot.slane %v1511, 2
        %v1610 = vrot.slane %v1512, 2
        %v1611 = vsel %vm1359, %v1609, %v1610
        %v1612 = vrot.slane %v1513, 2
        %v1613 = vsel %vm1359, %v1610, %v1612
        %v1614 = vrot.slane %v1514, 2
        %v1615 = vrot.slane %v1515, 2
        %v1616 = vsel %vm1359, %v1614, %v1615
        %v1617 = vrot.slane %v1516, 2
        %v1618 = vsel %vm1359, %v1615, %v1617
        %v1619 = vrot.slane %v1517, 2
        %v1620 = vrot.slane %v1518, 2
        %v1621 = vsel %vm1359, %v1619, %v1620
        %v1622 = vrot.slane %v1519, 2
        %v1623 = vsel %vm1359, %v1620, %v1622
        %v1624 = vrot.slane %v1520, 2
        %v1625 = vrot.slane %v1521, 2
        %v1626 = vsel %vm1359, %v1624, %v1625
        %v1627 = vrot.slane %v1522, 2
        %v1628 = vsel %vm1359, %v1625, %v1627
        %v1629 = vrot.slane %v1523, 2
        %v1630 = vrot.slane %v1524, 2
        %v1631 = vsel %vm1359, %v1629, %v1630
        %v1632 = vrot.slane %v1525, 2
        %v1633 = vsel %vm1359, %v1630, %v1632
        %v1634 = vrot.slane %v1526, 2
        %v1635 = vrot.slane %v1527, 2
        %v1636 = vsel %vm1359, %v1634, %v1635
        %v1637 = vrot.slane %v1528, 2
        %v1638 = vsel %vm1359, %v1635, %v1637
        %v1639 = vrot.slane %v1529, 2
        %v1640 = vrot.slane %v1530, 2
        %v1641 = vsel %vm1359, %v1639, %v1640
        %v1642 = vrot.slane %v1531, 2
        %v1643 = vsel %vm1359, %v1640, %v1642
        %v1644 = vrot.slane %v1532, 2
        %v1645 = vrot.slane %v1533, 2
        %v1646 = vsel %vm1359, %v1644, %v1645
        %v1647 = vrot.slane %v1534, 2
        %v1648 = vsel %vm1359, %v1645, %v1647
        %v1649 = vrot.slane %v1535, 2
        %v1650 = vrot.slane %v1536, 2
        %v1651 = vsel %vm1359, %v1649, %v1650
        %v1652 = vrot.slane %v1537, 2
        %v1653 = vsel %vm1359, %v1650, %v1652
        %v1654 = vrot.slane %v1538, 2
        %v1655 = vrot.slane %v1539, 2
        %v1656 = vsel %vm1359, %v1654, %v1655
        %v1657 = vrot.slane %v1540, 2
        %v1658 = vsel %vm1359, %v1655, %v1657
        %v1659 = vrot.slane %v1541, 2
        %v1660 = vrot.slane %v1542, 2
        %v1661 = vsel %vm1359, %v1659, %v1660
        %v1662 = vrot.slane %v1543, 2
        %v1663 = vsel %vm1359, %v1660, %v1662
        %v1664 = vrot.slane %v1544, 2
        %v1665 = vrot.slane %v1545, 2
        %v1666 = vsel %vm1359, %v1664, %v1665
        %v1667 = vrot.slane %v1546, 2
        %v1668 = vsel %vm1359, %v1665, %v1667
        %v1669 = vrot.slane %v1547, 2
        %v1670 = vrot.slane %v1548, 2
        %v1671 = vsel %vm1359, %v1669, %v1670
        %v1672 = vrot.slane %v1549, 2
        %v1673 = vsel %vm1359, %v1670, %v1672
        %v1674 = vrot.slane %v1550, 2
        %v1675 = vrot.slane %v1551, 2
        %v1676 = vsel %vm1359, %v1674, %v1675
        %v1677 = vrot.slane %v1552, 2
        %v1678 = vsel %vm1359, %v1675, %v1677
        %v1679 = vrot.slane %v1553, 2
        %v1680 = vrot.slane %v1554, 2
        %v1681 = vsel %vm1359, %v1679, %v1680
        %v1682 = vrot.slane %v1555, 2
        %v1683 = vsel %vm1359, %v1680, %v1682
        %v1716 = vadd.f32 %v1472, %v1606
        %v1717 = vadd.f32 %v1473, %v1608
        %v1718 = vadd.f32 %v1474, %v1611
        %v1719 = vadd.f32 %v1475, %v1613
        %v1720 = vadd.f32 %v1476, %v1616
        %v1721 = vadd.f32 %v1477, %v1618
        %v1722 = vadd.f32 %v1478, %v1621
        %v1723 = vadd.f32 %v1479, %v1623
        %v1724 = vadd.f32 %v1480, %v1626
        %v1725 = vadd.f32 %v1481, %v1628
        %v1726 = vadd.f32 %v1482, %v1631
        %v1727 = vadd.f32 %v1483, %v1633
        %v1728 = vadd.f32 %v1484, %v1636
        %v1729 = vadd.f32 %v1485, %v1638
        %v1730 = vadd.f32 %v1486, %v1641
        %v1731 = vadd.f32 %v1487, %v1643
        %v1732 = vadd.f32 %v1488, %v1646
        %v1733 = vadd.f32 %v1489, %v1648
        %v1734 = vadd.f32 %v1490, %v1651
        %v1735 = vadd.f32 %v1491, %v1653
        %v1736 = vadd.f32 %v1492, %v1656
        %v1737 = vadd.f32 %v1493, %v1658
        %v1738 = vadd.f32 %v1494, %v1661
        %v1739 = vadd.f32 %v1495, %v1663
        %v1740 = vadd.f32 %v1496, %v1666
        %v1741 = vadd.f32 %v1497, %v1668
        %v1742 = vadd.f32 %v1498, %v1671
        %v1743 = vadd.f32 %v1499, %v1673
        %v1744 = vadd.f32 %v1500, %v1676
        %v1745 = vadd.f32 %v1501, %v1678
        %v1746 = vadd.f32 %v1502, %v1681
        %v1747 = vadd.f32 %v1503, %v1683
        %v1748 = vlaneseq
        %v1749 = vshrl.u32 %v1748, 7
        %v1750 = vsub.s32 2, %v1749
        %v1751 = vrot.slane %v321, %v1750
        %v1752 = vmul.f32 %v271, %v1751
        %v1753 = vmul.f32 %v272, %v1751
        %v1754 = vmul.f32 %v273, %v1751
        %v1755 = vmul.f32 %v274, %v1751
        %v1756 = vmul.f32 %v275, %v1751
        %v1757 = vmul.f32 %v276, %v1751
        %v1758 = vmul.f32 %v277, %v1751
        %v1759 = vmul.f32 %v278, %v1751
        %v1760 = vmul.f32 %v279, %v1751
        %v1761 = vmul.f32 %v280, %v1751
        %v1762 = vmul.f32 %v281, %v1751
        %v1763 = vmul.f32 %v282, %v1751
        %v1764 = vmul.f32 %v283, %v1751
        %v1765 = vmul.f32 %v284, %v1751
        %v1766 = vmul.f32 %v285, %v1751
        %v1767 = vmul.f32 %v286, %v1751
        %v1768 = vmul.f32 %v287, %v1751
        %v1769 = vmul.f32 %v288, %v1751
        %v1770 = vmul.f32 %v289, %v1751
        %v1771 = vmul.f32 %v290, %v1751
        %v1772 = vmul.f32 %v291, %v1751
        %v1773 = vmul.f32 %v292, %v1751
        %v1774 = vmul.f32 %v293, %v1751
        %v1775 = vmul.f32 %v294, %v1751
        %v1776 = vmul.f32 %v295, %v1751
        %v1777 = vmul.f32 %v296, %v1751
        %v1778 = vmul.f32 %v297, %v1751
        %v1779 = vmul.f32 %v298, %v1751
        %v1780 = vmul.f32 %v299, %v1751
        %v1781 = vmul.f32 %v300, %v1751
        %v1782 = vmul.f32 %v301, %v1751
        %v1783 = vmul.f32 %v302, %v1751
        %v1784 = vmul.f32 %v303, %v1751
        %v1785 = vmul.f32 %v304, %v1751
        %v1786 = vmul.f32 %v305, %v1751
        %v1787 = vmul.f32 %v306, %v1751
        %v1788 = vmul.f32 %v307, %v1751
        %v1789 = vmul.f32 %v308, %v1751
        %v1790 = vmul.f32 %v309, %v1751
        %v1791 = vmul.f32 %v310, %v1751
        %v1792 = vmul.f32 %v311, %v1751
        %v1793 = vmul.f32 %v312, %v1751
        %v1794 = vmul.f32 %v313, %v1751
        %v1795 = vmul.f32 %v314, %v1751
        %v1796 = vmul.f32 %v315, %v1751
        %v1797 = vmul.f32 %v316, %v1751
        %v1798 = vmul.f32 %v317, %v1751
        %v1799 = vmul.f32 %v318, %v1751
        %v1848 = vrot.slane %v1752, 2
        %v1849 = vrot.slane %v1753, 2
        %v1850 = vsel %vm1359, %v1848, %v1849
        %v1851 = vrot.slane %v1754, 2
        %v1852 = vsel %vm1359, %v1849, %v1851
        %v1853 = vrot.slane %v1755, 2
        %v1854 = vrot.slane %v1756, 2
        %v1855 = vsel %vm1359, %v1853, %v1854
        %v1856 = vrot.slane %v1757, 2
        %v1857 = vsel %vm1359, %v1854, %v1856
        %v1858 = vrot.slane %v1758, 2
        %v1859 = vrot.slane %v1759, 2
        %v1860 = vsel %vm1359, %v1858, %v1859
        %v1861 = vrot.slane %v1760, 2
        %v1862 = vsel %vm1359, %v1859, %v1861
        %v1863 = vrot.slane %v1761, 2
        %v1864 = vrot.slane %v1762, 2
        %v1865 = vsel %vm1359, %v1863, %v1864
        %v1866 = vrot.slane %v1763, 2
        %v1867 = vsel %vm1359, %v1864, %v1866
        %v1868 = vrot.slane %v1764, 2
        %v1869 = vrot.slane %v1765, 2
        %v1870 = vsel %vm1359, %v1868, %v1869
        %v1871 = vrot.slane %v1766, 2
        %v1872 = vsel %vm1359, %v1869, %v1871
        %v1873 = vrot.slane %v1767, 2
        %v1874 = vrot.slane %v1768, 2
        %v1875 = vsel %vm1359, %v1873, %v1874
        %v1876 = vrot.slane %v1769, 2
        %v1877 = vsel %vm1359, %v1874, %v1876
        %v1878 = vrot.slane %v1770, 2
        %v1879 = vrot.slane %v1771, 2
        %v1880 = vsel %vm1359, %v1878, %v1879
        %v1881 = vrot.slane %v1772, 2
        %v1882 = vsel %vm1359, %v1879, %v1881
        %v1883 = vrot.slane %v1773, 2
        %v1884 = vrot.slane %v1774, 2
        %v1885 = vsel %vm1359, %v1883, %v1884
        %v1886 = vrot.slane %v1775, 2
        %v1887 = vsel %vm1359, %v1884, %v1886
        %v1888 = vrot.slane %v1776, 2
        %v1889 = vrot.slane %v1777, 2
        %v1890 = vsel %vm1359, %v1888, %v1889
        %v1891 = vrot.slane %v1778, 2
        %v1892 = vsel %vm1359, %v1889, %v1891
        %v1893 = vrot.slane %v1779, 2
        %v1894 = vrot.slane %v1780, 2
        %v1895 = vsel %vm1359, %v1893, %v1894
        %v1896 = vrot.slane %v1781, 2
        %v1897 = vsel %vm1359, %v1894, %v1896
        %v1898 = vrot.slane %v1782, 2
        %v1899 = vrot.slane %v1783, 2
        %v1900 = vsel %vm1359, %v1898, %v1899
        %v1901 = vrot.slane %v1784, 2
        %v1902 = vsel %vm1359, %v1899, %v1901
        %v1903 = vrot.slane %v1785, 2
        %v1904 = vrot.slane %v1786, 2
        %v1905 = vsel %vm1359, %v1903, %v1904
        %v1906 = vrot.slane %v1787, 2
        %v1907 = vsel %vm1359, %v1904, %v1906
        %v1908 = vrot.slane %v1788, 2
        %v1909 = vrot.slane %v1789, 2
        %v1910 = vsel %vm1359, %v1908, %v1909
        %v1911 = vrot.slane %v1790, 2
        %v1912 = vsel %vm1359, %v1909, %v1911
        %v1913 = vrot.slane %v1791, 2
        %v1914 = vrot.slane %v1792, 2
        %v1915 = vsel %vm1359, %v1913, %v1914
        %v1916 = vrot.slane %v1793, 2
        %v1917 = vsel %vm1359, %v1914, %v1916
        %v1918 = vrot.slane %v1794, 2
        %v1919 = vrot.slane %v1795, 2
        %v1920 = vsel %vm1359, %v1918, %v1919
        %v1921 = vrot.slane %v1796, 2
        %v1922 = vsel %vm1359, %v1919, %v1921
        %v1923 = vrot.slane %v1797, 2
        %v1924 = vrot.slane %v1798, 2
        %v1925 = vsel %vm1359, %v1923, %v1924
        %v1926 = vrot.slane %v1799, 2
        %v1927 = vsel %vm1359, %v1924, %v1926
        %v1960 = vadd.f32 %v1716, %v1850
        %v1961 = vadd.f32 %v1717, %v1852
        %v1962 = vadd.f32 %v1718, %v1855
        %v1963 = vadd.f32 %v1719, %v1857
        %v1964 = vadd.f32 %v1720, %v1860
        %v1965 = vadd.f32 %v1721, %v1862
        %v1966 = vadd.f32 %v1722, %v1865
        %v1967 = vadd.f32 %v1723, %v1867
        %v1968 = vadd.f32 %v1724, %v1870
        %v1969 = vadd.f32 %v1725, %v1872
        %v1970 = vadd.f32 %v1726, %v1875
        %v1971 = vadd.f32 %v1727, %v1877
        %v1972 = vadd.f32 %v1728, %v1880
        %v1973 = vadd.f32 %v1729, %v1882
        %v1974 = vadd.f32 %v1730, %v1885
        %v1975 = vadd.f32 %v1731, %v1887
        %v1976 = vadd.f32 %v1732, %v1890
        %v1977 = vadd.f32 %v1733, %v1892
        %v1978 = vadd.f32 %v1734, %v1895
        %v1979 = vadd.f32 %v1735, %v1897
        %v1980 = vadd.f32 %v1736, %v1900
        %v1981 = vadd.f32 %v1737, %v1902
        %v1982 = vadd.f32 %v1738, %v1905
        %v1983 = vadd.f32 %v1739, %v1907
        %v1984 = vadd.f32 %v1740, %v1910
        %v1985 = vadd.f32 %v1741, %v1912
        %v1986 = vadd.f32 %v1742, %v1915
        %v1987 = vadd.f32 %v1743, %v1917
        %v1988 = vadd.f32 %v1744, %v1920
        %v1989 = vadd.f32 %v1745, %v1922
        %v1990 = vadd.f32 %v1746, %v1925
        %v1991 = vadd.f32 %v1747, %v1927
        %v1992 = vld [vmem:[%s2] sm:$0x1]
        %v1994 = vlaneseq
        %v1995 = vshrl.u32 %v1994, 7
        %v1996 = vsub.s32 0, %v1995
        %v1997 = vrot.slane %v1992, %v1996
        %v1999 = vadd.f32 %v1960, %v1997
        %v2000 = vadd.f32 %v1961, %v1997
        %v2001 = vadd.f32 %v1962, %v1997
        %v2002 = vadd.f32 %v1963, %v1997
        %v2003 = vadd.f32 %v1964, %v1997
        %v2004 = vadd.f32 %v1965, %v1997
        %v2005 = vadd.f32 %v1966, %v1997
        %v2006 = vadd.f32 %v1967, %v1997
        %v2007 = vadd.f32 %v1968, %v1997
        %v2008 = vadd.f32 %v1969, %v1997
        %v2009 = vadd.f32 %v1970, %v1997
        %v2010 = vadd.f32 %v1971, %v1997
        %v2011 = vadd.f32 %v1972, %v1997
        %v2012 = vadd.f32 %v1973, %v1997
        %v2013 = vadd.f32 %v1974, %v1997
        %v2014 = vadd.f32 %v1975, %v1997
        %v2015 = vadd.f32 %v1976, %v1997
        %v2016 = vadd.f32 %v1977, %v1997
        %v2017 = vadd.f32 %v1978, %v1997
        %v2018 = vadd.f32 %v1979, %v1997
        %v2019 = vadd.f32 %v1980, %v1997
        %v2020 = vadd.f32 %v1981, %v1997
        %v2021 = vadd.f32 %v1982, %v1997
        %v2022 = vadd.f32 %v1983, %v1997
        %v2023 = vadd.f32 %v1984, %v1997
        %v2024 = vadd.f32 %v1985, %v1997
        %v2025 = vadd.f32 %v1986, %v1997
        %v2026 = vadd.f32 %v1987, %v1997
        %v2027 = vadd.f32 %v1988, %v1997
        %v2028 = vadd.f32 %v1989, %v1997
        %v2029 = vadd.f32 %v1990, %v1997
        %v2030 = vadd.f32 %v1991, %v1997
        %v2031 = vld [vmem:[%s3] sm:$0xff]
        %v2032 = vld [vmem:[%s4] sm:$0xff]
        %2034 = vset.pattern.permute.xlu0 0
        %2035 = vperm.xlu0 %2034, %v2032
        %v2036 = vpop.permute.xlu0 %2035
        %vm2038 = vcmask 31744
        %v2040 = vsel %vm2038, %v2031, 0
        %v2043 = vsel %vm2038, %v1999, 0
        %v2046 = vsel %vm2038, %v2000, 0
        %v2049 = vsel %vm2038, %v2001, 0
        %v2052 = vsel %vm2038, %v2002, 0
        %v2055 = vsel %vm2038, %v2003, 0
        %v2058 = vsel %vm2038, %v2004, 0
        %v2061 = vsel %vm2038, %v2005, 0
        %v2064 = vsel %vm2038, %v2006, 0
        %v2067 = vsel %vm2038, %v2007, 0
        %v2070 = vsel %vm2038, %v2008, 0
        %v2073 = vsel %vm2038, %v2009, 0
        %v2076 = vsel %vm2038, %v2010, 0
        %v2079 = vsel %vm2038, %v2011, 0
        %v2082 = vsel %vm2038, %v2012, 0
        %v2085 = vsel %vm2038, %v2013, 0
        %v2088 = vsel %vm2038, %v2014, 0
        %v2091 = vsel %vm2038, %v2015, 0
        %v2094 = vsel %vm2038, %v2016, 0
        %v2097 = vsel %vm2038, %v2017, 0
        %v2100 = vsel %vm2038, %v2018, 0
        %v2103 = vsel %vm2038, %v2019, 0
        %v2106 = vsel %vm2038, %v2020, 0
        %v2109 = vsel %vm2038, %v2021, 0
        %v2112 = vsel %vm2038, %v2022, 0
        %v2115 = vsel %vm2038, %v2023, 0
        %v2118 = vsel %vm2038, %v2024, 0
        %v2121 = vsel %vm2038, %v2025, 0
        %v2124 = vsel %vm2038, %v2026, 0
        %v2127 = vsel %vm2038, %v2027, 0
        %v2130 = vsel %vm2038, %v2028, 0
        %v2133 = vsel %vm2038, %v2029, 0
        %v2136 = vsel %vm2038, %v2030, 0
        %2138 = vmatprep.subr.mxu0 0.0
        %2139 = vmatpush1.xpose.msra.mxu0 %v2043
        %2140 = vmatprep.subr.mxu0 0.0
        %2141 = vmatpush1.xpose.msra.mxu0 %v2046
        %2142 = vmatprep.subr.mxu0 0.0
        %2143 = vmatpush1.xpose.msra.mxu0 %v2049
        %2144 = vmatprep.subr.mxu0 0.0
        %2145 = vmatpush1.xpose.msra.mxu0 %v2052
        %2146 = vmatprep.subr.mxu0 0.0
        %2147 = vmatpush1.xpose.msra.mxu0 %v2055
        %2148 = vmatprep.subr.mxu0 0.0
        %2149 = vmatpush1.xpose.msra.mxu0 %v2058
        %2150 = vmatprep.subr.mxu0 0.0
        %2151 = vmatpush1.xpose.msra.mxu0 %v2061
        %2152 = vmatprep.subr.mxu0 0.0
        %2153 = vmatpush1.xpose.msra.mxu0 %v2064
        %2154 = vmatprep.subr.mxu0 0.0
        %2155 = vmatpush1.xpose.msra.mxu0 %v2067
        %2156 = vmatprep.subr.mxu0 0.0
        %2157 = vmatpush1.xpose.msra.mxu0 %v2070
        %2158 = vmatprep.subr.mxu0 0.0
        %2159 = vmatpush1.xpose.msra.mxu0 %v2073
        %2160 = vmatprep.subr.mxu0 0.0
        %2161 = vmatpush1.xpose.msra.mxu0 %v2076
        %2162 = vmatprep.subr.mxu0 0.0
        %2163 = vmatpush1.xpose.msra.mxu0 %v2079
        %2164 = vmatprep.subr.mxu0 0.0
        %2165 = vmatpush1.xpose.msra.mxu0 %v2082
        %2166 = vmatprep.subr.mxu0 0.0
        %2167 = vmatpush1.xpose.msra.mxu0 %v2085
        %2168 = vmatprep.subr.mxu0 0.0
        %2169 = vmatpush1.xpose.msra.mxu0 %v2088
        %2170 = vmatprep.subr.mxu0 0.0
        %2171 = vmatpush1.xpose.msra.mxu0 %v2091
        %2172 = vmatprep.subr.mxu0 0.0
        %2173 = vmatpush1.xpose.msra.mxu0 %v2094
        %2174 = vmatprep.subr.mxu0 0.0
        %2175 = vmatpush1.xpose.msra.mxu0 %v2097
        %2176 = vmatprep.subr.mxu0 0.0
        %2177 = vmatpush1.xpose.msra.mxu0 %v2100
        %2178 = vmatprep.subr.mxu0 0.0
        %2179 = vmatpush1.xpose.msra.mxu0 %v2103
        %2180 = vmatprep.subr.mxu0 0.0
        %2181 = vmatpush1.xpose.msra.mxu0 %v2106
        %2182 = vmatprep.subr.mxu0 0.0
        %2183 = vmatpush1.xpose.msra.mxu0 %v2109
        %2184 = vmatprep.subr.mxu0 0.0
        %2185 = vmatpush1.xpose.msra.mxu0 %v2112
        %2186 = vmatprep.subr.mxu0 0.0
        %2187 = vmatpush1.xpose.msra.mxu0 %v2115
        %2188 = vmatprep.subr.mxu0 0.0
        %2189 = vmatpush1.xpose.msra.mxu0 %v2118
        %2190 = vmatprep.subr.mxu0 0.0
        %2191 = vmatpush1.xpose.msra.mxu0 %v2121
        %2192 = vmatprep.subr.mxu0 0.0
        %2193 = vmatpush1.xpose.msra.mxu0 %v2124
        %2194 = vmatprep.subr.mxu0 0.0
        %2195 = vmatpush1.xpose.msra.mxu0 %v2127
        %2196 = vmatprep.subr.mxu0 0.0
        %2197 = vmatpush1.xpose.msra.mxu0 %v2130
        %2198 = vmatprep.subr.mxu0 0.0
        %2199 = vmatpush1.xpose.msra.mxu0 %v2133
        %2200 = vmatprep.subr.mxu0 0.0
        %2201 = vmatpush1.xpose.msra.mxu0 %v2136
        %2202 = vmatprep.mubr.f32.mxu0 0.0
        %2203 = vmatmul.mubr.f32.gmra.mrb[0].mxu0 %v2040
        %v2204 = vpop.f32.mrb[0].mxu0
        %v2205 = vadd.f32 %v2036, %v2204
        %v2206 = vpop.f32.mrb[0].mxu0
        %v2207 = vadd.f32 %v2036, %v2206
        %2208 = vdwg.mxu0
        %s2209 = smul.u32 %s19, 2
        %s2210 = smul.addr %s2209, 8
        %s2211 = scalar_lea.vmem [#allocation2], %s2210
        %2212 = vst [vmem:[%s2211] sm:$0xff] %v2205
        %2213 = vst [vmem:[%s2211 + $0x8] sm:$0xff] %v2207
        %p2214 = scmp.eq.s32.totalorder %s19, 1
        // Predicated region
        $region49: #{tpu_custom_call.1} parent=47 // pred_check
          %p2215 = pneg %p2214
        $region50: #{tpu_custom_call.1} parent=47 // pred_check_branch
          %2217 = sbr.rel (%p2215) target = $region52
        $region51: #{tpu_custom_call.1} parent=47 // pred_region
          %v2218 = vld [vmem:[#allocation2] sm:$0xff]
          %v2219 = vld [vmem:[#allocation2 + $0x8] sm:$0xff]
          %v2220 = vld [vmem:[#allocation2 + $0x10] sm:$0xff]
          %v2221 = vld [vmem:[#allocation2 + $0x18] sm:$0xff]
          %v2222 = vadd.f32 %v2218, %v2219
          %2223 = vadd.xlane.f32.xlu0 %v2222
          %v2224 = vpop.xlane.xlu0 %2223
          %v2225 = vadd.f32 %v2220, %v2221
          %2226 = vadd.xlane.f32.xlu0 %v2225
          %v2227 = vpop.xlane.xlu0 %2226
          %v2228 = vadd.f32 %v2224, %v2227
          %v2229 = vmul.f32 %v2228, 0.001953125
          %v2230 = vsub.f32 %v2218, %v2229
          %v2231 = vsub.f32 %v2219, %v2229
          %v2232 = vsub.f32 %v2220, %v2229
          %v2233 = vsub.f32 %v2221, %v2229
          %v2234 = vmul.f32 %v2230, %v2230
          %v2235 = vmul.f32 %v2231, %v2231
          %v2236 = vmul.f32 %v2232, %v2232
          %v2237 = vmul.f32 %v2233, %v2233
          %v2238 = vadd.f32 %v2234, %v2235
          %2239 = vadd.xlane.f32.xlu0 %v2238
          %v2240 = vpop.xlane.xlu0 %2239
          %v2241 = vadd.f32 %v2236, %v2237
          %2242 = vadd.xlane.f32.xlu0 %v2241
          %v2243 = vpop.xlane.xlu0 %2242
          %v2244 = vadd.f32 %v2240, %v2243
          %v2245 = vmul.f32 %v2244, 0.001953125
          %v2246 = vmax.f32 %v2245, 0.0
          %v2247 = vadd.f32 %v2246, 1e-05
          %v2248 = vrsqrt.pop %v2247
          %v2249 = vld [vmem:[%s5] sm:$0xff]
          %v2250 = vmul.f32 %v2249, %v2248
          %v2251 = vld [vmem:[%s6] sm:$0xff]
          %v2252 = vmul.f32 %v2229, %v2250
          %v2253 = vsub.f32 %v2251, %v2252
          %2255 = vset.pattern.permute.xlu0 0
          %2256 = vperm.xlu0 %2255, %v2250
          %v2257 = vpop.permute.xlu0 %2256
          %v2259 = vmul.f32 %v2218, %v2257
          %v2260 = vmul.f32 %v2219, %v2257
          %v2261 = vmul.f32 %v2220, %v2257
          %v2262 = vmul.f32 %v2221, %v2257
          %2264 = vset.pattern.permute.xlu0 0
          %2265 = vperm.xlu0 %2264, %v2253
          %v2266 = vpop.permute.xlu0 %2265
          %v2268 = vadd.f32 %v2259, %v2266
          %v2269 = vadd.f32 %v2260, %v2266
          %v2270 = vadd.f32 %v2261, %v2266
          %v2271 = vadd.f32 %v2262, %v2266
          %v2272 = vmax.f32 %v2268, 0.0
          %v2273 = vmax.f32 %v2269, 0.0
          %v2274 = vmax.f32 %v2270, 0.0
          %v2275 = vmax.f32 %v2271, 0.0
          %2276 = vst [vmem:[#allocation2] sm:$0xff] %v2272
          %2277 = vst [vmem:[#allocation2 + $0x8] sm:$0xff] %v2273
          %2278 = vst [vmem:[#allocation2 + $0x10] sm:$0xff] %v2274
          %2279 = vst [vmem:[#allocation2 + $0x18] sm:$0xff] %v2275
        $region52: #{tpu_custom_call.1} parent=47 // pred_fallthru
          _
        // Predicated region
        $region53: #{tpu_custom_call.1} parent=47 // pred_check
          %p2280 = pneg %p184
        $region54: #{tpu_custom_call.1} parent=47 // pred_check_branch
          %2282 = sbr.rel (%p2280) target = $region56
        $region55: #{tpu_custom_call.1} parent=47 // pred_region
          %s2284 = ssub.s32 512, 512
          %2285 = vsyncadd [#allocation3], %s2284
          %s2286 = sshll.u32 [#allocation2], 4
          %s2287 = int_to_ptr.vmem [resolvable:$true] %s2286
          %2292 = dma.vmem_to_hbm [thread:$0]  %s2287, 512, %s7, [#allocation3], 256, 256, 16
        $region56: #{tpu_custom_call.1} parent=47 // pred_fallthru
          _
        // Predicated region
        $region57: #{tpu_custom_call.1} parent=47 // pred_check
          %p2293 = pneg %p184
        $region58: #{tpu_custom_call.1} parent=47 // pred_check_branch
          %2295 = sbr.rel (%p2293) target = $region60
        $region59: #{tpu_custom_call.1} parent=47 // pred_region
          %2296 = dma.done [#allocation3], 512
        $region60: #{tpu_custom_call.1} parent=47 // pred_fallthru
          _
      $region48: #{tpu_custom_call.1} parent=5 // pred_fallthru
        _
      %p2297 = scmp.le.s32.totalorder 2, %s14
      // Predicated region
      $region61: #{tpu_custom_call.1} parent=5 // pred_check
        %p2298 = pneg %p2297
      $region62: #{tpu_custom_call.1} parent=5 // pred_check_branch
        %2300 = sbr.rel (%p2298) target = $region64
      $region63: #{tpu_custom_call.1} parent=5 // pred_region
        %s2301 = ssub.s32 %s14, 2
      $region64: #{tpu_custom_call.1} parent=5 // pred_fallthru
        _
    $region6: #{tpu_custom_call.1} parent=1 // loop_footer
      %s18 = sadd.s32 1, %s14
    $region7: #{tpu_custom_call.1} parent=1 // loop_footer_branch
      %13 = sbr.rel target = $region3
    $region8: #{tpu_custom_call.1} parent=1 // loop_exit
      _
    %2302 = vsyncpa [#allocation3], 1
    %s2303 = scalar_lea.sflag [#allocation3], 1
    %2304 = vsyncpa %s2303, 1

</llo_original>
